<compile_context>
chip_gen: v7x
topology: tpu7x:2x2x1
jax: 0.10.0
libtpu: 0.0.40
codegen_flags: <defaults>
</compile_context>

<pallas_src>
from functools import partial

import jax
import jax.numpy as jnp
from jax import lax
from jax.experimental import pallas as pl
from jax.experimental.pallas import tpu as pltpu


# ----------------------------- tile pickers -----------------------------------

def _pick_conv_row_tile(ho, wo, target_m=256):
    """Smallest divisor th of ho with (th*wo) % 8 == 0 and th*wo >= target_m
    (MXU M-dim target).  Falls back to the largest legal divisor (ho == full extent)."""
    best = ho
    for th in range(1, ho + 1):
        if ho % th:
            continue
        m = th * wo
        if th != ho and m % 8 != 0:
            continue
        best = th
        if m >= target_m:
            break
    return best


def _pick_pool_row_tile(ho, c, w2, target_bytes=2 << 20):
    """Smallest divisor th of ho (multiple of 8, or the full extent) whose f32 input
    block is ~2 MiB, so per-step DMA is well amortized and VMEM stays bounded."""
    best = ho
    for th in range(1, ho + 1):
        if ho % th:
            continue
        if th != ho and th % 8 != 0:
            continue
        best = th
        if th * c * w2 * 4 >= target_bytes:
            break
    return best


# ----------------------------- Pallas kernels ----------------------------------

def _conv_down_kernel(x_ref, w_ref, b_ref, o_ref, *, th, wo, c_in):
    """3x3 / stride-2 / pad-1 conv, one (batch, output-row-tile) grid step.

    x_ref: [1, 2, 2, Hh, Wh, C_in]  bf16 phase-split zero-padded input (channel-last);
                                    phase (p, q) holds x_pad[p::2, q::2, :]
    w_ref: [9*C_in, C_out]          bf16 K-fused weight, row index = (kh*3+kw)*C_in + ci
    b_ref: [1, C_out]               f32 bias
    o_ref: [1, th*Wo, C_out]        lane-dense output slab for rows [t*th, (t+1)*th)
    """
    t = pl.program_id(1)
    pieces = []
    for kh in range(3):
        for kw in range(3):
            ph, pw = kh % 2, kw % 2
            dh, dw = kh // 2, kw // 2
            # output (i, j) needs x_pad[2i+kh, 2j+kw] == phase[kh%2, kw%2][i+kh//2, j+kw//2]
            p = x_ref[0, ph, pw, pl.ds(t * th + dh, th), pl.ds(dw, wo), :]   # [th, Wo, C_in]
            pieces.append(p.reshape(th * wo, c_in))
    slab = jnp.concatenate(pieces, axis=1)                                   # [th*Wo, 9*C_in] bf16
    acc = jnp.dot(slab, w_ref[...], preferred_element_type=jnp.float32)      # MXU, f32 accum
    o_ref[0] = (acc + b_ref[...].astype(jnp.float32)).astype(o_ref.dtype)


def _avgpool_down_kernel(x_ref, q_ref, o_ref, *, c, th, wo):
    """2x2 / stride-2 average pool, one (batch, output-row-tile) grid step (NCHW-native).

    x_ref: [1, C, th, 2*W]  f32; "row" io holds (input row 2*io) ++ (input row 2*io+1)
    q_ref: [2*W, Wo]        bf16 0/1 pooling matrix: Q[u, jo] = ((u % W)//2 == jo)
    o_ref: [1, C, th, Wo]   NCHW output tile
    """
    x = x_ref[0].astype(jnp.bfloat16)                     # bf16 operands, exact *1.0 products
    w2 = x.shape[-1]
    y = jnp.dot(x.reshape(c * th, w2), q_ref[...],
                preferred_element_type=jnp.float32)       # [C*th, Wo], f32 accumulation
    o_ref[0] = (0.25 * y).reshape(c, th, wo).astype(o_ref.dtype)


# ----------------------------- wrappers -----------------------------------------

@jax.jit
def downsample_conv(x_nchw, w_oihw, bias):
    """use_conv=True path.  w_oihw: [C_out, C_in, 3, 3] (PyTorch layout), bias: [C_out]."""
    B, C_in, H, W = x_nchw.shape
    C_out = w_oihw.shape[0]
    assert w_oihw.shape[1] == C_in and w_oihw.shape[2:] == (3, 3)
    Ho = (H - 1) // 2 + 1
    Wo = (W - 1) // 2 + 1

    # --- weight / bias prep (tiny): OIHW -> [(kh,kw,ci), co], bf16 ---
    w_fused = jnp.transpose(w_oihw, (2, 3, 1, 0)).reshape(9 * C_in, C_out).astype(jnp.bfloat16)
    bias2 = bias.reshape(1, C_out).astype(jnp.float32)

    # --- input prep: bf16 + NHWC + zero-pad + 2x2 phase split (fused copy passes) ---
    x = jnp.transpose(x_nchw.astype(jnp.bfloat16), (0, 2, 3, 1))      # [B, H, W, C]
    pad_h, pad_w = H % 2, W % 2                                       # keep split dims even
    x = jnp.pad(x, ((0, 0), (1, 1 + pad_h), (1, 1 + pad_w), (0, 0)))
    Hh, Wh = (H + 2 + pad_h) // 2, (W + 2 + pad_w) // 2
    x = x.reshape(B, Hh, 2, Wh, 2, C_in).transpose(0, 2, 4, 1, 3, 5)  # [B, 2, 2, Hh, Wh, C]

    th = _pick_conv_row_tile(Ho, Wo)
    T = Ho // th
    kernel = partial(_conv_down_kernel, th=th, wo=Wo, c_in=C_in)
    out = pl.pallas_call(
        kernel,
        out_shape=jax.ShapeDtypeStruct((B, Ho * Wo, C_out), x_nchw.dtype),
        grid=(B, T),
        in_specs=[
            # whole phase-split image per batch; constant over the row-tile axis
            # (Pallas skips the re-DMA when the block index repeats).
            pl.BlockSpec((1, 2, 2, Hh, Wh, C_in), lambda b, t: (b, 0, 0, 0, 0, 0)),
            pl.BlockSpec((9 * C_in, C_out), lambda b, t: (0, 0)),     # resident weight
            pl.BlockSpec((1, C_out), lambda b, t: (0, 0)),            # resident bias
        ],
        out_specs=pl.BlockSpec((1, th * Wo, C_out), lambda b, t: (b, t, 0)),
        compiler_params=pltpu.CompilerParams(
            dimension_semantics=("parallel", "parallel"),
            vmem_limit_bytes=48 * 1024 * 1024),
    )(x, w_fused, bias2)

    out = out.reshape(B, Ho, Wo, C_out)
    return jnp.transpose(out, (0, 3, 1, 2))                           # -> NCHW


@jax.jit
def downsample_avgpool(x_nchw):
    """use_conv=False path: AvgPool2d(kernel_size=2, stride=2), NCHW in / NCHW out."""
    B, C, H, W = x_nchw.shape
    Ho, Wo = H // 2, W // 2
    x = x_nchw if H == 2 * Ho else x_nchw[:, :, :2 * Ho, :]           # PyTorch floor semantics
    xr = x.reshape(B, C, Ho, 2 * W)                                   # free bitcast reshape

    # 0/1 pooling matrix: column jo picks input columns {2jo, 2jo+1} of both rows of the pair.
    u = jnp.arange(2 * W)
    jo = jnp.arange(Wo)
    q = ((u[:, None] % W) // 2 == jo[None, :]).astype(jnp.bfloat16)   # [2W, Wo]

    th = _pick_pool_row_tile(Ho, C, 2 * W)
    T = Ho // th
    out = pl.pallas_call(
        partial(_avgpool_down_kernel, c=C, th=th, wo=Wo),
        out_shape=jax.ShapeDtypeStruct((B, C, Ho, Wo), x_nchw.dtype),
        grid=(B, T),
        in_specs=[
            pl.BlockSpec((1, C, th, 2 * W), lambda b, t: (b, 0, t, 0)),
            pl.BlockSpec((2 * W, Wo), lambda b, t: (0, 0)),
        ],
        out_specs=pl.BlockSpec((1, C, th, Wo), lambda b, t: (b, 0, t, 0)),
        compiler_params=pltpu.CompilerParams(
            dimension_semantics=("parallel", "parallel"),
            vmem_limit_bytes=48 * 1024 * 1024),
    )(xr, q)
    return out                                                        # already NCHW


def downsample(x_nchw, *, use_conv, weight=None, bias=None, dims=2):
    """Downsample.forward(x)."""
    assert dims == 2, "only dims=2 implemented"  # TODO(synk): dims=1 / dims=3 variants
    if use_conv:
        return downsample_conv(x_nchw, weight, bias)
    return downsample_avgpool(x_nchw)


# ----------------------------- pure-JAX references ------------------------------
# The kernels use bf16 MXU operands with f32 accumulation (per perf review); the
# references quantize the operands the same way so the asserts can be tight.

def _ref_conv(x, w_oihw, bias):
    xq = x.astype(jnp.bfloat16).astype(jnp.float32)
    wq = w_oihw.astype(jnp.bfloat16).astype(jnp.float32)
    y = lax.conv_general_dilated(
        xq, wq, window_strides=(2, 2), padding=((1, 1), (1, 1)),
        dimension_numbers=("NCHW", "OIHW", "NCHW"),
        precision=lax.Precision.HIGHEST)
    return y + bias.reshape(1, -1, 1, 1)


def _ref_avgpool(x):
    B, C, H, W = x.shape
    xq = x.astype(jnp.bfloat16).astype(jnp.float32)
    xq = xq[:, :, :H // 2 * 2, :W // 2 * 2]
    return xq.reshape(B, C, H // 2, 2, W // 2, 2).mean(axis=(3, 5))


# ----------------------------- main ---------------------------------------------

if __name__ == "__main__":
    B, C, H, W = 2, 128, 16, 16
    C_OUT = 256

    key = jax.random.PRNGKey(0)
    k1, k2, k3 = jax.random.split(key, 3)
    x = jax.random.normal(k1, (B, C, H, W), jnp.float32)
    w = 0.05 * jax.random.normal(k2, (C_OUT, C, 3, 3), jnp.float32)   # OIHW (PyTorch layout)
    b = 0.05 * jax.random.normal(k3, (C_OUT,), jnp.float32)

    # use_conv=True path
    out_conv = jax.block_until_ready(downsample(x, use_conv=True, weight=w, bias=b))
    ref_conv = _ref_conv(x, w, b)
    assert out_conv.shape == (B, C_OUT, H // 2, W // 2), out_conv.shape
    err_conv = float(jnp.max(jnp.abs(out_conv - ref_conv)))
    assert err_conv < 3e-3, f"conv max abs err {err_conv}"

    # use_conv=False path
    out_pool = jax.block_until_ready(downsample(x, use_conv=False))
    ref_pool = _ref_avgpool(x)
    assert out_pool.shape == (B, C, H // 2, W // 2), out_pool.shape
    err_pool = float(jnp.max(jnp.abs(out_pool - ref_pool)))
    assert err_pool < 1e-4, f"avgpool max abs err {err_pool}"

    print("KERNEL_OK")
</pallas_src>

<mosaic_0001>
module attributes {stable_mosaic.version = 11 : i64} {
  func.func @_conv_down_kernel(%arg0: i32, %arg1: i32, %arg2: memref<1x2x2x9x9x128xbf16, #tpu.memory_space<vmem>>, %arg3: memref<1152x256xbf16, #tpu.memory_space<vmem>>, %arg4: memref<1x256xf32, #tpu.memory_space<vmem>>, %arg5: memref<1x64x256xf32, #tpu.memory_space<vmem>>) attributes {dimension_semantics = [#tpu.dimension_semantics<parallel>, #tpu.dimension_semantics<parallel>], iteration_bounds = array<i64: 2, 1>, scalar_prefetch = 0 : i64, scratch_operands = 0 : i64, tpu.core_type = #tpu.core_type<tc>, window_params = [{transform_indices = @transform_0, window_bounds = array<i64: 1, 2, 2, 9, 9, 128>}, {pipeline_mode = #tpu.pipeline_mode<synchronous>, transform_indices = @transform_1, window_bounds = array<i64: 1152, 256>}, {pipeline_mode = #tpu.pipeline_mode<synchronous>, transform_indices = @transform_2, window_bounds = array<i64: 1, 256>}, {transform_indices = @transform_3, window_bounds = array<i64: 1, 64, 256>}]} {
    %c8_i32 = arith.constant 8 : i32
    %0 = arith.muli %arg1, %c8_i32 : i32
    %c0_i32 = arith.constant 0 : i32
    %1 = arith.addi %0, %c0_i32 : i32
    %c0 = arith.constant 0 : index
    %c0_0 = arith.constant 0 : index
    %c0_1 = arith.constant 0 : index
    %2 = arith.index_cast %1 : i32 to index
    %c0_2 = arith.constant 0 : index
    %c0_3 = arith.constant 0 : index
    %3 = vector.load %arg2[%c0, %c0_0, %c0_1, %2, %c0_2, %c0_3] : memref<1x2x2x9x9x128xbf16, #tpu.memory_space<vmem>>, vector<1x1x1x8x8x128xbf16>
    %4 = vector.shape_cast %3 : vector<1x1x1x8x8x128xbf16> to vector<8x8x128xbf16>
    %5 = vector.shape_cast %4 : vector<8x8x128xbf16> to vector<64x128xbf16>
    %c8_i32_4 = arith.constant 8 : i32
    %6 = arith.muli %arg1, %c8_i32_4 : i32
    %c0_i32_5 = arith.constant 0 : i32
    %7 = arith.addi %6, %c0_i32_5 : i32
    %c0_6 = arith.constant 0 : index
    %c0_7 = arith.constant 0 : index
    %c1 = arith.constant 1 : index
    %8 = arith.index_cast %7 : i32 to index
    %c0_8 = arith.constant 0 : index
    %c0_9 = arith.constant 0 : index
    %9 = vector.load %arg2[%c0_6, %c0_7, %c1, %8, %c0_8, %c0_9] : memref<1x2x2x9x9x128xbf16, #tpu.memory_space<vmem>>, vector<1x1x1x8x8x128xbf16>
    %10 = vector.shape_cast %9 : vector<1x1x1x8x8x128xbf16> to vector<8x8x128xbf16>
    %11 = vector.shape_cast %10 : vector<8x8x128xbf16> to vector<64x128xbf16>
    %c8_i32_10 = arith.constant 8 : i32
    %12 = arith.muli %arg1, %c8_i32_10 : i32
    %c0_i32_11 = arith.constant 0 : i32
    %13 = arith.addi %12, %c0_i32_11 : i32
    %c0_12 = arith.constant 0 : index
    %c0_13 = arith.constant 0 : index
    %c0_14 = arith.constant 0 : index
    %14 = arith.index_cast %13 : i32 to index
    %c1_15 = arith.constant 1 : index
    %c0_16 = arith.constant 0 : index
    %15 = vector.load %arg2[%c0_12, %c0_13, %c0_14, %14, %c1_15, %c0_16] : memref<1x2x2x9x9x128xbf16, #tpu.memory_space<vmem>>, vector<1x1x1x8x8x128xbf16>
    %16 = vector.shape_cast %15 : vector<1x1x1x8x8x128xbf16> to vector<8x8x128xbf16>
    %17 = vector.shape_cast %16 : vector<8x8x128xbf16> to vector<64x128xbf16>
    %c8_i32_17 = arith.constant 8 : i32
    %18 = arith.muli %arg1, %c8_i32_17 : i32
    %c0_i32_18 = arith.constant 0 : i32
    %19 = arith.addi %18, %c0_i32_18 : i32
    %c0_19 = arith.constant 0 : index
    %c1_20 = arith.constant 1 : index
    %c0_21 = arith.constant 0 : index
    %20 = arith.index_cast %19 : i32 to index
    %c0_22 = arith.constant 0 : index
    %c0_23 = arith.constant 0 : index
    %21 = vector.load %arg2[%c0_19, %c1_20, %c0_21, %20, %c0_22, %c0_23] : memref<1x2x2x9x9x128xbf16, #tpu.memory_space<vmem>>, vector<1x1x1x8x8x128xbf16>
    %22 = vector.shape_cast %21 : vector<1x1x1x8x8x128xbf16> to vector<8x8x128xbf16>
    %23 = vector.shape_cast %22 : vector<8x8x128xbf16> to vector<64x128xbf16>
    %c8_i32_24 = arith.constant 8 : i32
    %24 = arith.muli %arg1, %c8_i32_24 : i32
    %c0_i32_25 = arith.constant 0 : i32
    %25 = arith.addi %24, %c0_i32_25 : i32
    %c0_26 = arith.constant 0 : index
    %c1_27 = arith.constant 1 : index
    %c1_28 = arith.constant 1 : index
    %26 = arith.index_cast %25 : i32 to index
    %c0_29 = arith.constant 0 : index
    %c0_30 = arith.constant 0 : index
    %27 = vector.load %arg2[%c0_26, %c1_27, %c1_28, %26, %c0_29, %c0_30] : memref<1x2x2x9x9x128xbf16, #tpu.memory_space<vmem>>, vector<1x1x1x8x8x128xbf16>
    %28 = vector.shape_cast %27 : vector<1x1x1x8x8x128xbf16> to vector<8x8x128xbf16>
    %29 = vector.shape_cast %28 : vector<8x8x128xbf16> to vector<64x128xbf16>
    %c8_i32_31 = arith.constant 8 : i32
    %30 = arith.muli %arg1, %c8_i32_31 : i32
    %c0_i32_32 = arith.constant 0 : i32
    %31 = arith.addi %30, %c0_i32_32 : i32
    %c0_33 = arith.constant 0 : index
    %c1_34 = arith.constant 1 : index
    %c0_35 = arith.constant 0 : index
    %32 = arith.index_cast %31 : i32 to index
    %c1_36 = arith.constant 1 : index
    %c0_37 = arith.constant 0 : index
    %33 = vector.load %arg2[%c0_33, %c1_34, %c0_35, %32, %c1_36, %c0_37] : memref<1x2x2x9x9x128xbf16, #tpu.memory_space<vmem>>, vector<1x1x1x8x8x128xbf16>
    %34 = vector.shape_cast %33 : vector<1x1x1x8x8x128xbf16> to vector<8x8x128xbf16>
    %35 = vector.shape_cast %34 : vector<8x8x128xbf16> to vector<64x128xbf16>
    %c8_i32_38 = arith.constant 8 : i32
    %36 = arith.muli %arg1, %c8_i32_38 : i32
    %c1_i32 = arith.constant 1 : i32
    %37 = arith.addi %36, %c1_i32 : i32
    %c0_39 = arith.constant 0 : index
    %c0_40 = arith.constant 0 : index
    %c0_41 = arith.constant 0 : index
    %38 = arith.index_cast %37 : i32 to index
    %c0_42 = arith.constant 0 : index
    %c0_43 = arith.constant 0 : index
    %39 = vector.load %arg2[%c0_39, %c0_40, %c0_41, %38, %c0_42, %c0_43] : memref<1x2x2x9x9x128xbf16, #tpu.memory_space<vmem>>, vector<1x1x1x8x8x128xbf16>
    %40 = vector.shape_cast %39 : vector<1x1x1x8x8x128xbf16> to vector<8x8x128xbf16>
    %41 = vector.shape_cast %40 : vector<8x8x128xbf16> to vector<64x128xbf16>
    %c8_i32_44 = arith.constant 8 : i32
    %42 = arith.muli %arg1, %c8_i32_44 : i32
    %c1_i32_45 = arith.constant 1 : i32
    %43 = arith.addi %42, %c1_i32_45 : i32
    %c0_46 = arith.constant 0 : index
    %c0_47 = arith.constant 0 : index
    %c1_48 = arith.constant 1 : index
    %44 = arith.index_cast %43 : i32 to index
    %c0_49 = arith.constant 0 : index
    %c0_50 = arith.constant 0 : index
    %45 = vector.load %arg2[%c0_46, %c0_47, %c1_48, %44, %c0_49, %c0_50] : memref<1x2x2x9x9x128xbf16, #tpu.memory_space<vmem>>, vector<1x1x1x8x8x128xbf16>
    %46 = vector.shape_cast %45 : vector<1x1x1x8x8x128xbf16> to vector<8x8x128xbf16>
    %47 = vector.shape_cast %46 : vector<8x8x128xbf16> to vector<64x128xbf16>
    %c8_i32_51 = arith.constant 8 : i32
    %48 = arith.muli %arg1, %c8_i32_51 : i32
    %c1_i32_52 = arith.constant 1 : i32
    %49 = arith.addi %48, %c1_i32_52 : i32
    %c0_53 = arith.constant 0 : index
    %c0_54 = arith.constant 0 : index
    %c0_55 = arith.constant 0 : index
    %50 = arith.index_cast %49 : i32 to index
    %c1_56 = arith.constant 1 : index
    %c0_57 = arith.constant 0 : index
    %51 = vector.load %arg2[%c0_53, %c0_54, %c0_55, %50, %c1_56, %c0_57] : memref<1x2x2x9x9x128xbf16, #tpu.memory_space<vmem>>, vector<1x1x1x8x8x128xbf16>
    %52 = vector.shape_cast %51 : vector<1x1x1x8x8x128xbf16> to vector<8x8x128xbf16>
    %53 = vector.shape_cast %52 : vector<8x8x128xbf16> to vector<64x128xbf16>
    %54 = tpu.concatenate %5, %11, %17, %23, %29, %35, %41, %47, %53 in 1 : vector<64x128xbf16>, vector<64x128xbf16>, vector<64x128xbf16>, vector<64x128xbf16>, vector<64x128xbf16>, vector<64x128xbf16>, vector<64x128xbf16>, vector<64x128xbf16>, vector<64x128xbf16> -> vector<64x1152xbf16>
    %c0_58 = arith.constant 0 : index
    %c0_59 = arith.constant 0 : index
    %55 = vector.load %arg3[%c0_58, %c0_59] : memref<1152x256xbf16, #tpu.memory_space<vmem>>, vector<1152x256xbf16>
    %cst = arith.constant dense<0.000000e+00> : vector<64x256xf32>
    %56 = tpu.matmul %54, %55, %cst {dimension_numbers = #tpu.dot_dimension_numbers<[1], [0], [0], [1], [0, 0, 1, 1], [], []>} : vector<64x1152xbf16>, vector<1152x256xbf16>, vector<64x256xf32> -> vector<64x256xf32>
    %c0_60 = arith.constant 0 : index
    %c0_61 = arith.constant 0 : index
    %57 = vector.load %arg4[%c0_60, %c0_61] : memref<1x256xf32, #tpu.memory_space<vmem>>, vector<1x256xf32>
    %58 = vector.broadcast %57 : vector<1x256xf32> to vector<64x256xf32>
    %59 = arith.addf %56, %58 : vector<64x256xf32>
    %c0_62 = arith.constant 0 : index
    %c0_63 = arith.constant 0 : index
    %c0_64 = arith.constant 0 : index
    %60 = vector.load %arg5[%c0_62, %c0_63, %c0_64] : memref<1x64x256xf32, #tpu.memory_space<vmem>>, vector<1x64x256xf32>
    %61 = vector.shape_cast %60 : vector<1x64x256xf32> to vector<64x256xf32>
    %62 = vector.shape_cast %59 : vector<64x256xf32> to vector<1x64x256xf32>
    tpu.vector_store %arg5[%c0_62, %c0_63, %c0_64], %62 {strides = array<i32>} : memref<1x64x256xf32, #tpu.memory_space<vmem>>, vector<1x64x256xf32>,
    return
  }
  func.func @transform_0(%arg0: i32, %arg1: i32) -> (i32, i32, i32, i32, i32, i32) {
    %c0_i32 = arith.constant 0 : i32
    %c0_i32_0 = arith.constant 0 : i32
    %c0_i32_1 = arith.constant 0 : i32
    %c0_i32_2 = arith.constant 0 : i32
    %c0_i32_3 = arith.constant 0 : i32
    %c0_i32_4 = arith.constant 0 : i32
    return %arg0, %c0_i32, %c0_i32_0, %c0_i32_1, %c0_i32_2, %c0_i32_3 : i32, i32, i32, i32, i32, i32
  }
  func.func @transform_1(%arg0: i32, %arg1: i32) -> (i32, i32) {
    %c0_i32 = arith.constant 0 : i32
    %c0_i32_0 = arith.constant 0 : i32
    %c0_i32_1 = arith.constant 0 : i32
    return %c0_i32, %c0_i32_0 : i32, i32
  }
  func.func @transform_2(%arg0: i32, %arg1: i32) -> (i32, i32) {
    %c0_i32 = arith.constant 0 : i32
    %c0_i32_0 = arith.constant 0 : i32
    %c0_i32_1 = arith.constant 0 : i32
    return %c0_i32, %c0_i32_0 : i32, i32
  }
  func.func @transform_3(%arg0: i32, %arg1: i32) -> (i32, i32, i32) {
    %c0_i32 = arith.constant 0 : i32
    %c0_i32_0 = arith.constant 0 : i32
    return %arg0, %arg1, %c0_i32 : i32, i32, i32
  }
}

</mosaic_0001>

<llo_original>
// kernel: downsample_conv.1
$region0: #{downsample_conv.1}
  #allocation0 [shape = 'u32[]', space=smem, size = 0x4, offset = 0x4, fixed_abs, tag = 'smem constant byte address 0x4 - core index']
  #allocation1 [shape = 'u32[144,128]{1,0:T(1,128)}', space=vmem, size = 0x12000, scoped, tag = 'internal scratch']
  %s0 = inlined_call_operand.vmem [shape: bf16[2,2,2,9,9,128], index: 0, kind: input, shape index: {}]
  %s1 = inlined_call_operand.vmem [shape: bf16[1152,256], index: 1, kind: input, shape index: {}]
  %s2 = inlined_call_operand.vmem [shape: f32[1,256], index: 2, kind: input, shape index: {}]
  %s3 = inlined_call_operand.hbm [shape: f32[2,64,256], index: 3, kind: output, shape index: {}]
  %s4 = sld [smem:[#allocation0]]
  $region45: #{downsample_conv.1} parent=0
    _
  %s6 = ssub.s32 1, %s4
  %s7 = scalar_select 0, %s6, %s4
  $region1: #{downsample_conv.1} parent=0
    #allocation2 [shape = 'u8[131072]{0}', space=vmem, size = 0x20000, scoped, tag = 'output window, operand 0']
    #allocation3 [shape = 's32[2]{0}', space=sflag, size = 0x8, scoped, tag = 'scoped memory for downsample_conv.1']
    %8 = vsyncpa [#allocation3], 0
    %s9 = scalar_lea.sflag [#allocation3], 1
    %10 = vsyncpa %s9, 0
    loop: start=0, step=1, limit=4
    $region2: #{downsample_conv.1} parent=1 // loop_pre_header
      _
    $region3: #{downsample_conv.1} parent=1 // loop_header
      %s12 = sphi 0, %s16
      %p13 = scmp.ge.s32.totalorder %s12, 4
      %s19 = sphi 0, %s31
      %s20 = sphi 0, %s27
      %s21 = sphi 0, %s19
      %s22 = sphi 0, %s20
      %s23 = sphi 0, %s21
      %s24 = sphi 0, %s22
      %s34 = sphi 0, %s36
      %s37 = sphi 0, %s34
      %s38 = sphi 0, %s37
      %s54 = sphi 0, %s38
      %s58 = sphi 0, %s58
      %s60 = sphi 0, %s58
      %s61 = sphi 0, %s60
      %s75 = sphi 0, %s61
      %s79 = sphi 0, %s79
      %s81 = sphi 0, %s79
      %s82 = sphi 0, %s81
      %s96 = sphi 0, %s82
      %s104 = sphi 0, %s106
      %s107 = sphi 0, %s104
      %s108 = sphi 0, %s107
      %s124 = sphi 0, %s108
    $region4: #{downsample_conv.1} parent=1 // loop_header_branch
      %15 = sbr.rel (%p13) target = $region8
    $region5: #{downsample_conv.1} parent=1 // loop_body
      %s17 = ssub.s32 %s12, 1
      %s18 = ssub.s32 %s12, 2
      %s25 = sadd.s32 1, %s20
      %p26 = scmp.ge.s32.totalorder %s25, 1
      %s27 = scalar_select %p26, 0, %s25
      %s28 = sadd.s32 1, %s19
      %s29 = scalar_select %p26, %s28, %s19
      %p30 = scmp.ge.s32.totalorder %s29, 2
      %s31 = scalar_select %p30, 0, %s29
      %s32 = ssub.s32 %s19, %s31
      %p33 = scmp.eq.s32.totalorder %s32, 0
      %s35 = sadd.s32 %s34, 1
      %s36 = scalar_select %p33, %s34, %s35
      %p39 = pneg %p33
      %p40 = scmp.eq.s32.totalorder %s12, 1
      %p41 = por %p39, %p40
      %p42 = scmp.ne.s32.totalorder %s34, %s37
      %p43 = scmp.eq.s32.totalorder %s12, 0
      %p44 = por %p42, %p43
      %p45 = scmp.ne.s32.totalorder %s34, %s37
      %p46 = scmp.eq.s32.totalorder %s17, 1
      %p47 = por %p45, %p46
      %p48 = scmp.ne.s32.totalorder %s37, %s38
      %p49 = scmp.eq.s32.totalorder %s17, 0
      %p50 = por %p48, %p49
      %p51 = scmp.ne.s32.totalorder %s37, %s38
      %p52 = scmp.eq.s32.totalorder %s18, 1
      %p53 = por %p51, %p52
      %p55 = scmp.ne.s32.totalorder %s38, %s54
      %p56 = scmp.eq.s32.totalorder %s18, 0
      %p57 = por %p55, %p56
      %s59 = sadd.s32 %s58, 1
      %p62 = scmp.eq.s32.totalorder %s12, 1
      %p63 = scmp.ne.s32.totalorder %s58, %s60
      %p64 = scmp.eq.s32.totalorder %s12, 0
      %p65 = por %p63, %p64
      %p66 = scmp.ne.s32.totalorder %s58, %s60
      %p67 = scmp.eq.s32.totalorder %s17, 1
      %p68 = por %p66, %p67
      %p69 = scmp.ne.s32.totalorder %s60, %s61
      %p70 = scmp.eq.s32.totalorder %s17, 0
      %p71 = por %p69, %p70
      %p72 = scmp.ne.s32.totalorder %s60, %s61
      %p73 = scmp.eq.s32.totalorder %s18, 1
      %p74 = por %p72, %p73
      %p76 = scmp.ne.s32.totalorder %s61, %s75
      %p77 = scmp.eq.s32.totalorder %s18, 0
      %p78 = por %p76, %p77
      %s80 = sadd.s32 %s79, 1
      %p83 = scmp.eq.s32.totalorder %s12, 1
      %p84 = scmp.ne.s32.totalorder %s79, %s81
      %p85 = scmp.eq.s32.totalorder %s12, 0
      %p86 = por %p84, %p85
      %p87 = scmp.ne.s32.totalorder %s79, %s81
      %p88 = scmp.eq.s32.totalorder %s17, 1
      %p89 = por %p87, %p88
      %p90 = scmp.ne.s32.totalorder %s81, %s82
      %p91 = scmp.eq.s32.totalorder %s17, 0
      %p92 = por %p90, %p91
      %p93 = scmp.ne.s32.totalorder %s81, %s82
      %p94 = scmp.eq.s32.totalorder %s18, 1
      %p95 = por %p93, %p94
      %p97 = scmp.ne.s32.totalorder %s82, %s96
      %p98 = scmp.eq.s32.totalorder %s18, 0
      %p99 = por %p97, %p98
      %s100 = ssub.s32 %s19, %s31
      %s101 = ssub.s32 %s20, %s27
      %s102 = sor.u32 %s100, %s101
      %p103 = scmp.eq.s32.totalorder %s102, 0
      %s105 = sadd.s32 %s104, 1
      %s106 = scalar_select %p103, %s104, %s105
      %p109 = pneg %p103
      %p110 = scmp.eq.s32.totalorder %s12, 1
      %p111 = por %p109, %p110
      %p112 = scmp.ne.s32.totalorder %s104, %s107
      %p113 = scmp.eq.s32.totalorder %s12, 0
      %p114 = por %p112, %p113
      %p115 = scmp.ne.s32.totalorder %s104, %s107
      %p116 = scmp.eq.s32.totalorder %s17, 1
      %p117 = por %p115, %p116
      %p118 = scmp.ne.s32.totalorder %s107, %s108
      %p119 = scmp.eq.s32.totalorder %s17, 0
      %p120 = por %p118, %p119
      %p121 = scmp.ne.s32.totalorder %s107, %s108
      %p122 = scmp.eq.s32.totalorder %s18, 1
      %p123 = por %p121, %p122
      %p125 = scmp.ne.s32.totalorder %s108, %s124
      %p126 = scmp.eq.s32.totalorder %s18, 0
      %p127 = por %p125, %p126
      %p128 = scmp.le.s32.totalorder 1, %s12
      %p129 = scmp.lt.s32.totalorder %s12, 3
      %p130 = pnand %p128, %p129
      %p131 = pneg %p130
      // Predicated region
      $region9: #{downsample_conv.1} parent=5 // pred_check
        _
      $region10: #{downsample_conv.1} parent=5 // pred_check_branch
        %133 = sbr.rel (%p130) target = $region12
      $region11: #{downsample_conv.1} parent=5 // pred_region
        %s134 = ssub.s32 %s12, 1
        // Predicated region
        $region13: #{downsample_conv.1} parent=11 // pred_check
          %p135 = pneg %p71
        $region14: #{downsample_conv.1} parent=11 // pred_check_branch
          %137 = sbr.rel (%p135) target = $region16
        $region15: #{downsample_conv.1} parent=11 // pred_region
          _
        $region16: #{downsample_conv.1} parent=11 // pred_fallthru
          _
        // Predicated region
        $region17: #{downsample_conv.1} parent=11 // pred_check
          %p138 = pneg %p92
        $region18: #{downsample_conv.1} parent=11 // pred_check_branch
          %140 = sbr.rel (%p138) target = $region20
        $region19: #{downsample_conv.1} parent=11 // pred_region
          _
        $region20: #{downsample_conv.1} parent=11 // pred_fallthru
          _
      $region12: #{downsample_conv.1} parent=5 // pred_fallthru
        _
      %p141 = scmp.lt.s32.totalorder %s12, 2
      // Predicated region
      $region21: #{downsample_conv.1} parent=5 // pred_check
        %p142 = pneg %p141
      $region22: #{downsample_conv.1} parent=5 // pred_check_branch
        %144 = sbr.rel (%p142) target = $region24
      $region23: #{downsample_conv.1} parent=5 // pred_region
        // Predicated region
        $region25: #{downsample_conv.1} parent=23 // pred_check
          %p145 = pneg %p44
        $region26: #{downsample_conv.1} parent=23 // pred_check_branch
          %147 = sbr.rel (%p145) target = $region28
        $region27: #{downsample_conv.1} parent=23 // pred_region
          %p148 = scmp.lt.s32.totalorder %s19, 1
          %s149 = scalar_select %p148, %s19, 1
          %s150 = smul.addr %s149, 72
          %s151 = smul.addr %s150, 4
          %s152 = scalar_lea.vmem %s0, %s151
        $region28: #{downsample_conv.1} parent=23 // pred_fallthru
          _
      $region24: #{downsample_conv.1} parent=5 // pred_fallthru
        _
      %p153 = scmp.le.s32.totalorder 1, %s12
      %p154 = scmp.lt.s32.totalorder %s12, 3
      %p155 = pnand %p153, %p154
      %p156 = pneg %p155
      // Predicated region
      $region29: #{downsample_conv.1} parent=5 // pred_check
        _
      $region30: #{downsample_conv.1} parent=5 // pred_check_branch
        %158 = sbr.rel (%p155) target = $region32
      $region31: #{downsample_conv.1} parent=5 // pred_region
        %s159 = ssub.s32 %s12, 1
        %p160 = scmp.lt.s32.totalorder %s21, 1
        %s161 = scalar_select %p160, %s21, 1
        %s162 = smul.addr %s161, 72
        %s163 = smul.addr %s162, 4
        %s164 = scalar_lea.vmem %s0, %s163
        %p165 = pneg %p50
        %p166 = pneg %p47
        %p167 = pneg %p71
        %p168 = pneg %p68
        %p169 = pneg %p92
        %p170 = pneg %p89
        %p171 = pneg %p120
        %p172 = pneg %p117
        %s173 = sand.u32 %s107, 1
        %s174 = scalar_lea.sflag [#allocation3], %s173
        %s175 = sand.u32 %s107, 1
        %s176 = smul.addr %s175, 128
        %s177 = scalar_lea.vmem [#allocation2], %s176
        %p178 = scmp.lt.s32.totalorder %s21, 1
        %s179 = scalar_select %p178, %s21, 1
        %s180 = smul.addr %s179, 72
        %s181 = smul.addr %s180, 4
        %s182 = scalar_lea.vmem %s0, %s181
        %s183 = smul.u32 8, %s22
        %s185 = smul.u32 %s22, 8
        %s186 = smul.u32 %s185, 2
        %s187 = smul.addr %s186, 4
        %s188 = scalar_lea.vmem %s182, %s187
        %v189 = vld [vmem:[%s188] sm:$0xf]
        %v190 = vld [vmem:[%s188 + $0x8] sm:$0xf]
        %v191 = vld [vmem:[%s188 + $0x10] sm:$0xf]
        %v192 = vld [vmem:[%s188 + $0x18] sm:$0xf]
        %v193 = vld [vmem:[%s188 + $0x20] sm:$0xf]
        %v194 = vld [vmem:[%s188 + $0x28] sm:$0xf]
        %v195 = vld [vmem:[%s188 + $0x30] sm:$0xf]
        %v196 = vld [vmem:[%s188 + $0x38] sm:$0xf]
        %s197 = sadd.s32 %s186, 18
        %s198 = smul.addr %s197, 4
        %s199 = scalar_lea.vmem %s182, %s198
        %v200 = vld [vmem:[%s199] sm:$0xf]
        %v201 = vld [vmem:[%s199 + $0x8] sm:$0xf]
        %v202 = vld [vmem:[%s199 + $0x10] sm:$0xf]
        %v203 = vld [vmem:[%s199 + $0x18] sm:$0xf]
        %v204 = vld [vmem:[%s199 + $0x20] sm:$0xf]
        %v205 = vld [vmem:[%s199 + $0x28] sm:$0xf]
        %v206 = vld [vmem:[%s199 + $0x30] sm:$0xf]
        %v207 = vld [vmem:[%s199 + $0x38] sm:$0xf]
        %v208 = vld [vmem:[%s188 + $0x4] sm:$0x1]
        %v209 = vld [vmem:[%s188 + $0xc] sm:$0x1]
        %v210 = vld [vmem:[%s188 + $0x14] sm:$0x1]
        %v211 = vld [vmem:[%s188 + $0x1c] sm:$0x1]
        %v212 = vld [vmem:[%s188 + $0x24] sm:$0x1]
        %v213 = vld [vmem:[%s188 + $0x2c] sm:$0x1]
        %v214 = vld [vmem:[%s188 + $0x34] sm:$0x1]
        %v215 = vld [vmem:[%s188 + $0x3c] sm:$0x1]
        %vm216 = vsmask.f32 3328
        %vm217 = vsmask.f32 7440
        %vm218 = vmor %vm216, %vm217
        %v220 = vshrl.u32 %v189, 16
        %v222 = vrot.slane %v220, 4
        %v223 = vshll.u32 %v189, 16
        %v225 = vrot.slane %v223, 5
        %v226 = vor.u32 %v222, %v225
        %v227 = vrot.slane %v226, 4
        %v229 = vshll.u32 %v208, 16
        %v231 = vrot.slane %v229, 5
        %v232 = vsel %vm218, %v227, %v231
        %v234 = vshrl.u32 %v190, 16
        %v236 = vrot.slane %v234, 4
        %v237 = vshll.u32 %v190, 16
        %v239 = vrot.slane %v237, 5
        %v240 = vor.u32 %v236, %v239
        %v241 = vrot.slane %v240, 4
        %v243 = vshll.u32 %v209, 16
        %v245 = vrot.slane %v243, 5
        %v246 = vsel %vm218, %v241, %v245
        %v248 = vshrl.u32 %v191, 16
        %v250 = vrot.slane %v248, 4
        %v251 = vshll.u32 %v191, 16
        %v253 = vrot.slane %v251, 5
        %v254 = vor.u32 %v250, %v253
        %v255 = vrot.slane %v254, 4
        %v257 = vshll.u32 %v210, 16
        %v259 = vrot.slane %v257, 5
        %v260 = vsel %vm218, %v255, %v259
        %v262 = vshrl.u32 %v192, 16
        %v264 = vrot.slane %v262, 4
        %v265 = vshll.u32 %v192, 16
        %v267 = vrot.slane %v265, 5
        %v268 = vor.u32 %v264, %v267
        %v269 = vrot.slane %v268, 4
        %v271 = vshll.u32 %v211, 16
        %v273 = vrot.slane %v271, 5
        %v274 = vsel %vm218, %v269, %v273
        %v276 = vshrl.u32 %v193, 16
        %v278 = vrot.slane %v276, 4
        %v279 = vshll.u32 %v193, 16
        %v281 = vrot.slane %v279, 5
        %v282 = vor.u32 %v278, %v281
        %v283 = vrot.slane %v282, 4
        %v285 = vshll.u32 %v212, 16
        %v287 = vrot.slane %v285, 5
        %v288 = vsel %vm218, %v283, %v287
        %v290 = vshrl.u32 %v194, 16
        %v292 = vrot.slane %v290, 4
        %v293 = vshll.u32 %v194, 16
        %v295 = vrot.slane %v293, 5
        %v296 = vor.u32 %v292, %v295
        %v297 = vrot.slane %v296, 4
        %v299 = vshll.u32 %v213, 16
        %v301 = vrot.slane %v299, 5
        %v302 = vsel %vm218, %v297, %v301
        %v304 = vshrl.u32 %v195, 16
        %v306 = vrot.slane %v304, 4
        %v307 = vshll.u32 %v195, 16
        %v309 = vrot.slane %v307, 5
        %v310 = vor.u32 %v306, %v309
        %v311 = vrot.slane %v310, 4
        %v313 = vshll.u32 %v214, 16
        %v315 = vrot.slane %v313, 5
        %v316 = vsel %vm218, %v311, %v315
        %v318 = vshrl.u32 %v196, 16
        %v320 = vrot.slane %v318, 4
        %v321 = vshll.u32 %v196, 16
        %v323 = vrot.slane %v321, 5
        %v324 = vor.u32 %v320, %v323
        %v325 = vrot.slane %v324, 4
        %v327 = vshll.u32 %v215, 16
        %v329 = vrot.slane %v327, 5
        %v330 = vsel %vm218, %v325, %v329
        %s331 = sadd.s32 %s186, 36
        %s332 = smul.addr %s331, 4
        %s333 = scalar_lea.vmem %s182, %s332
        %v334 = vld [vmem:[%s333] sm:$0xf]
        %v335 = vld [vmem:[%s333 + $0x8] sm:$0xf]
        %v336 = vld [vmem:[%s333 + $0x10] sm:$0xf]
        %v337 = vld [vmem:[%s333 + $0x18] sm:$0xf]
        %v338 = vld [vmem:[%s333 + $0x20] sm:$0xf]
        %v339 = vld [vmem:[%s333 + $0x28] sm:$0xf]
        %v340 = vld [vmem:[%s333 + $0x30] sm:$0xf]
        %v341 = vld [vmem:[%s333 + $0x38] sm:$0xf]
        %s342 = sadd.s32 %s197, 36
        %s343 = smul.addr %s342, 4
        %s344 = scalar_lea.vmem %s182, %s343
        %v345 = vld [vmem:[%s344] sm:$0xf]
        %v346 = vld [vmem:[%s344 + $0x8] sm:$0xf]
        %v347 = vld [vmem:[%s344 + $0x10] sm:$0xf]
        %v348 = vld [vmem:[%s344 + $0x18] sm:$0xf]
        %v349 = vld [vmem:[%s344 + $0x20] sm:$0xf]
        %v350 = vld [vmem:[%s344 + $0x28] sm:$0xf]
        %v351 = vld [vmem:[%s344 + $0x30] sm:$0xf]
        %v352 = vld [vmem:[%s344 + $0x38] sm:$0xf]
        %v353 = vld [vmem:[%s333 + $0x4] sm:$0x1]
        %v354 = vld [vmem:[%s333 + $0xc] sm:$0x1]
        %v355 = vld [vmem:[%s333 + $0x14] sm:$0x1]
        %v356 = vld [vmem:[%s333 + $0x1c] sm:$0x1]
        %v357 = vld [vmem:[%s333 + $0x24] sm:$0x1]
        %v358 = vld [vmem:[%s333 + $0x2c] sm:$0x1]
        %v359 = vld [vmem:[%s333 + $0x34] sm:$0x1]
        %v360 = vld [vmem:[%s333 + $0x3c] sm:$0x1]
        %v362 = vshrl.u32 %v334, 16
        %v364 = vrot.slane %v362, 4
        %v365 = vshll.u32 %v334, 16
        %v367 = vrot.slane %v365, 5
        %v368 = vor.u32 %v364, %v367
        %v369 = vrot.slane %v368, 4
        %v371 = vshll.u32 %v353, 16
        %v373 = vrot.slane %v371, 5
        %v374 = vsel %vm218, %v369, %v373
        %v376 = vshrl.u32 %v335, 16
        %v378 = vrot.slane %v376, 4
        %v379 = vshll.u32 %v335, 16
        %v381 = vrot.slane %v379, 5
        %v382 = vor.u32 %v378, %v381
        %v383 = vrot.slane %v382, 4
        %v385 = vshll.u32 %v354, 16
        %v387 = vrot.slane %v385, 5
        %v388 = vsel %vm218, %v383, %v387
        %v390 = vshrl.u32 %v336, 16
        %v392 = vrot.slane %v390, 4
        %v393 = vshll.u32 %v336, 16
        %v395 = vrot.slane %v393, 5
        %v396 = vor.u32 %v392, %v395
        %v397 = vrot.slane %v396, 4
        %v399 = vshll.u32 %v355, 16
        %v401 = vrot.slane %v399, 5
        %v402 = vsel %vm218, %v397, %v401
        %v404 = vshrl.u32 %v337, 16
        %v406 = vrot.slane %v404, 4
        %v407 = vshll.u32 %v337, 16
        %v409 = vrot.slane %v407, 5
        %v410 = vor.u32 %v406, %v409
        %v411 = vrot.slane %v410, 4
        %v413 = vshll.u32 %v356, 16
        %v415 = vrot.slane %v413, 5
        %v416 = vsel %vm218, %v411, %v415
        %v418 = vshrl.u32 %v338, 16
        %v420 = vrot.slane %v418, 4
        %v421 = vshll.u32 %v338, 16
        %v423 = vrot.slane %v421, 5
        %v424 = vor.u32 %v420, %v423
        %v425 = vrot.slane %v424, 4
        %v427 = vshll.u32 %v357, 16
        %v429 = vrot.slane %v427, 5
        %v430 = vsel %vm218, %v425, %v429
        %v432 = vshrl.u32 %v339, 16
        %v434 = vrot.slane %v432, 4
        %v435 = vshll.u32 %v339, 16
        %v437 = vrot.slane %v435, 5
        %v438 = vor.u32 %v434, %v437
        %v439 = vrot.slane %v438, 4
        %v441 = vshll.u32 %v358, 16
        %v443 = vrot.slane %v441, 5
        %v444 = vsel %vm218, %v439, %v443
        %v446 = vshrl.u32 %v340, 16
        %v448 = vrot.slane %v446, 4
        %v449 = vshll.u32 %v340, 16
        %v451 = vrot.slane %v449, 5
        %v452 = vor.u32 %v448, %v451
        %v453 = vrot.slane %v452, 4
        %v455 = vshll.u32 %v359, 16
        %v457 = vrot.slane %v455, 5
        %v458 = vsel %vm218, %v453, %v457
        %v460 = vshrl.u32 %v341, 16
        %v462 = vrot.slane %v460, 4
        %v463 = vshll.u32 %v341, 16
        %v465 = vrot.slane %v463, 5
        %v466 = vor.u32 %v462, %v465
        %v467 = vrot.slane %v466, 4
        %v469 = vshll.u32 %v360, 16
        %v471 = vrot.slane %v469, 5
        %v472 = vsel %vm218, %v467, %v471
        %s473 = sadd.s32 %s185, 1
        %s474 = smul.u32 %s473, 2
        %s475 = smul.addr %s474, 4
        %s476 = scalar_lea.vmem %s182, %s475
        %v477 = vld [vmem:[%s476] sm:$0xf]
        %v478 = vld [vmem:[%s476 + $0x8] sm:$0xf]
        %v479 = vld [vmem:[%s476 + $0x10] sm:$0xf]
        %v480 = vld [vmem:[%s476 + $0x18] sm:$0xf]
        %v481 = vld [vmem:[%s476 + $0x20] sm:$0xf]
        %v482 = vld [vmem:[%s476 + $0x28] sm:$0xf]
        %v483 = vld [vmem:[%s476 + $0x30] sm:$0xf]
        %v484 = vld [vmem:[%s476 + $0x38] sm:$0xf]
        %s485 = sadd.s32 %s474, 18
        %s486 = smul.addr %s485, 4
        %s487 = scalar_lea.vmem %s182, %s486
        %v488 = vld [vmem:[%s487] sm:$0xf]
        %v489 = vld [vmem:[%s487 + $0x8] sm:$0xf]
        %v490 = vld [vmem:[%s487 + $0x10] sm:$0xf]
        %v491 = vld [vmem:[%s487 + $0x18] sm:$0xf]
        %v492 = vld [vmem:[%s487 + $0x20] sm:$0xf]
        %v493 = vld [vmem:[%s487 + $0x28] sm:$0xf]
        %v494 = vld [vmem:[%s487 + $0x30] sm:$0xf]
        %v495 = vld [vmem:[%s487 + $0x38] sm:$0xf]
        %v496 = vld [vmem:[%s476 + $0x4] sm:$0x1]
        %v497 = vld [vmem:[%s476 + $0xc] sm:$0x1]
        %v498 = vld [vmem:[%s476 + $0x14] sm:$0x1]
        %v499 = vld [vmem:[%s476 + $0x1c] sm:$0x1]
        %v500 = vld [vmem:[%s476 + $0x24] sm:$0x1]
        %v501 = vld [vmem:[%s476 + $0x2c] sm:$0x1]
        %v502 = vld [vmem:[%s476 + $0x34] sm:$0x1]
        %v503 = vld [vmem:[%s476 + $0x3c] sm:$0x1]
        %v505 = vshrl.u32 %v477, 16
        %v507 = vrot.slane %v505, 4
        %v508 = vshll.u32 %v477, 16
        %v510 = vrot.slane %v508, 5
        %v511 = vor.u32 %v507, %v510
        %v512 = vrot.slane %v511, 4
        %v514 = vshll.u32 %v496, 16
        %v516 = vrot.slane %v514, 5
        %v517 = vsel %vm218, %v512, %v516
        %v519 = vshrl.u32 %v478, 16
        %v521 = vrot.slane %v519, 4
        %v522 = vshll.u32 %v478, 16
        %v524 = vrot.slane %v522, 5
        %v525 = vor.u32 %v521, %v524
        %v526 = vrot.slane %v525, 4
        %v528 = vshll.u32 %v497, 16
        %v530 = vrot.slane %v528, 5
        %v531 = vsel %vm218, %v526, %v530
        %v533 = vshrl.u32 %v479, 16
        %v535 = vrot.slane %v533, 4
        %v536 = vshll.u32 %v479, 16
        %v538 = vrot.slane %v536, 5
        %v539 = vor.u32 %v535, %v538
        %v540 = vrot.slane %v539, 4
        %v542 = vshll.u32 %v498, 16
        %v544 = vrot.slane %v542, 5
        %v545 = vsel %vm218, %v540, %v544
        %v547 = vshrl.u32 %v480, 16
        %v549 = vrot.slane %v547, 4
        %v550 = vshll.u32 %v480, 16
        %v552 = vrot.slane %v550, 5
        %v553 = vor.u32 %v549, %v552
        %v554 = vrot.slane %v553, 4
        %v556 = vshll.u32 %v499, 16
        %v558 = vrot.slane %v556, 5
        %v559 = vsel %vm218, %v554, %v558
        %v561 = vshrl.u32 %v481, 16
        %v563 = vrot.slane %v561, 4
        %v564 = vshll.u32 %v481, 16
        %v566 = vrot.slane %v564, 5
        %v567 = vor.u32 %v563, %v566
        %v568 = vrot.slane %v567, 4
        %v570 = vshll.u32 %v500, 16
        %v572 = vrot.slane %v570, 5
        %v573 = vsel %vm218, %v568, %v572
        %v575 = vshrl.u32 %v482, 16
        %v577 = vrot.slane %v575, 4
        %v578 = vshll.u32 %v482, 16
        %v580 = vrot.slane %v578, 5
        %v581 = vor.u32 %v577, %v580
        %v582 = vrot.slane %v581, 4
        %v584 = vshll.u32 %v501, 16
        %v586 = vrot.slane %v584, 5
        %v587 = vsel %vm218, %v582, %v586
        %v589 = vshrl.u32 %v483, 16
        %v591 = vrot.slane %v589, 4
        %v592 = vshll.u32 %v483, 16
        %v594 = vrot.slane %v592, 5
        %v595 = vor.u32 %v591, %v594
        %v596 = vrot.slane %v595, 4
        %v598 = vshll.u32 %v502, 16
        %v600 = vrot.slane %v598, 5
        %v601 = vsel %vm218, %v596, %v600
        %v603 = vshrl.u32 %v484, 16
        %v605 = vrot.slane %v603, 4
        %v606 = vshll.u32 %v484, 16
        %v608 = vrot.slane %v606, 5
        %v609 = vor.u32 %v605, %v608
        %v610 = vrot.slane %v609, 4
        %v612 = vshll.u32 %v503, 16
        %v614 = vrot.slane %v612, 5
        %v615 = vsel %vm218, %v610, %v614
        %v624 = vunpack.c.l.b16 %v189
        %v625 = vunpack.c.l.b16 %v190
        %v626 = vunpack.c.l.b16 %v191
        %v627 = vunpack.c.l.b16 %v192
        %v628 = vunpack.c.l.b16 %v193
        %v629 = vunpack.c.l.b16 %v194
        %v630 = vunpack.c.l.b16 %v195
        %v631 = vunpack.c.l.b16 %v196
        %v632 = vpack.c.b16 %v625, %v624
        %v633 = vpack.c.b16 %v627, %v626
        %v634 = vpack.c.b16 %v629, %v628
        %v635 = vpack.c.b16 %v631, %v630
        %v648 = vunpack.c.l.b16 %v200
        %v649 = vunpack.c.l.b16 %v201
        %v650 = vunpack.c.l.b16 %v202
        %v651 = vunpack.c.l.b16 %v203
        %v652 = vunpack.c.l.b16 %v204
        %v653 = vunpack.c.l.b16 %v205
        %v654 = vunpack.c.l.b16 %v206
        %v655 = vunpack.c.l.b16 %v207
        %v656 = vpack.c.b16 %v649, %v648
        %v657 = vpack.c.b16 %v651, %v650
        %v658 = vpack.c.b16 %v653, %v652
        %v659 = vpack.c.b16 %v655, %v654
        %v664 = vunpack.c.l.b16 %v232
        %v665 = vunpack.c.l.b16 %v246
        %v666 = vunpack.c.l.b16 %v260
        %v667 = vunpack.c.l.b16 %v274
        %v668 = vunpack.c.l.b16 %v288
        %v669 = vunpack.c.l.b16 %v302
        %v670 = vunpack.c.l.b16 %v316
        %v671 = vunpack.c.l.b16 %v330
        %v672 = vpack.c.b16 %v665, %v664
        %v673 = vpack.c.b16 %v667, %v666
        %v674 = vpack.c.b16 %v669, %v668
        %v675 = vpack.c.b16 %v671, %v670
        %v688 = vunpack.c.l.b16 %v334
        %v689 = vunpack.c.l.b16 %v335
        %v690 = vunpack.c.l.b16 %v336
        %v691 = vunpack.c.l.b16 %v337
        %v692 = vunpack.c.l.b16 %v338
        %v693 = vunpack.c.l.b16 %v339
        %v694 = vunpack.c.l.b16 %v340
        %v695 = vunpack.c.l.b16 %v341
        %v696 = vpack.c.b16 %v689, %v688
        %v697 = vpack.c.b16 %v691, %v690
        %v698 = vpack.c.b16 %v693, %v692
        %v699 = vpack.c.b16 %v695, %v694
        %v712 = vunpack.c.l.b16 %v345
        %v713 = vunpack.c.l.b16 %v346
        %v714 = vunpack.c.l.b16 %v347
        %v715 = vunpack.c.l.b16 %v348
        %v716 = vunpack.c.l.b16 %v349
        %v717 = vunpack.c.l.b16 %v350
        %v718 = vunpack.c.l.b16 %v351
        %v719 = vunpack.c.l.b16 %v352
        %v720 = vpack.c.b16 %v713, %v712
        %v721 = vpack.c.b16 %v715, %v714
        %v722 = vpack.c.b16 %v717, %v716
        %v723 = vpack.c.b16 %v719, %v718
        %v728 = vunpack.c.l.b16 %v374
        %v729 = vunpack.c.l.b16 %v388
        %v730 = vunpack.c.l.b16 %v402
        %v731 = vunpack.c.l.b16 %v416
        %v732 = vunpack.c.l.b16 %v430
        %v733 = vunpack.c.l.b16 %v444
        %v734 = vunpack.c.l.b16 %v458
        %v735 = vunpack.c.l.b16 %v472
        %v736 = vpack.c.b16 %v729, %v728
        %v737 = vpack.c.b16 %v731, %v730
        %v738 = vpack.c.b16 %v733, %v732
        %v739 = vpack.c.b16 %v735, %v734
        %v752 = vunpack.c.l.b16 %v477
        %v753 = vunpack.c.l.b16 %v478
        %v754 = vunpack.c.l.b16 %v479
        %v755 = vunpack.c.l.b16 %v480
        %v756 = vunpack.c.l.b16 %v481
        %v757 = vunpack.c.l.b16 %v482
        %v758 = vunpack.c.l.b16 %v483
        %v759 = vunpack.c.l.b16 %v484
        %v760 = vpack.c.b16 %v753, %v752
        %v761 = vpack.c.b16 %v755, %v754
        %v762 = vpack.c.b16 %v757, %v756
        %v763 = vpack.c.b16 %v759, %v758
        %v776 = vunpack.c.l.b16 %v488
        %v777 = vunpack.c.l.b16 %v489
        %v778 = vunpack.c.l.b16 %v490
        %v779 = vunpack.c.l.b16 %v491
        %v780 = vunpack.c.l.b16 %v492
        %v781 = vunpack.c.l.b16 %v493
        %v782 = vunpack.c.l.b16 %v494
        %v783 = vunpack.c.l.b16 %v495
        %v784 = vpack.c.b16 %v777, %v776
        %v785 = vpack.c.b16 %v779, %v778
        %v786 = vpack.c.b16 %v781, %v780
        %v787 = vpack.c.b16 %v783, %v782
        %v792 = vunpack.c.l.b16 %v517
        %v793 = vunpack.c.l.b16 %v531
        %v794 = vunpack.c.l.b16 %v545
        %v795 = vunpack.c.l.b16 %v559
        %v796 = vunpack.c.l.b16 %v573
        %v797 = vunpack.c.l.b16 %v587
        %v798 = vunpack.c.l.b16 %v601
        %v799 = vunpack.c.l.b16 %v615
        %v800 = vpack.c.b16 %v793, %v792
        %v801 = vpack.c.b16 %v795, %v794
        %v802 = vpack.c.b16 %v797, %v796
        %v803 = vpack.c.b16 %v799, %v798
        %v808 = vld [vmem:[%s1] sm:$0xff]
        %v809 = vld [vmem:[%s1 + $0x8] sm:$0xff]
        %v810 = vld [vmem:[%s1 + $0x10] sm:$0xff]
        %v811 = vld [vmem:[%s1 + $0x18] sm:$0xff]
        %v812 = vld [vmem:[%s1 + $0x20] sm:$0xff]
        %v813 = vld [vmem:[%s1 + $0x28] sm:$0xff]
        %v814 = vld [vmem:[%s1 + $0x30] sm:$0xff]
        %v815 = vld [vmem:[%s1 + $0x38] sm:$0xff]
        %v816 = vld [vmem:[%s1 + $0x40] sm:$0xff]
        %v817 = vld [vmem:[%s1 + $0x48] sm:$0xff]
        %v818 = vld [vmem:[%s1 + $0x50] sm:$0xff]
        %v819 = vld [vmem:[%s1 + $0x58] sm:$0xff]
        %v820 = vld [vmem:[%s1 + $0x60] sm:$0xff]
        %v821 = vld [vmem:[%s1 + $0x68] sm:$0xff]
        %v822 = vld [vmem:[%s1 + $0x70] sm:$0xff]
        %v823 = vld [vmem:[%s1 + $0x78] sm:$0xff]
        %v824 = vld [vmem:[%s1 + $0x80] sm:$0xff]
        %v825 = vld [vmem:[%s1 + $0x88] sm:$0xff]
        %v826 = vld [vmem:[%s1 + $0x90] sm:$0xff]
        %v827 = vld [vmem:[%s1 + $0x98] sm:$0xff]
        %v828 = vld [vmem:[%s1 + $0xa0] sm:$0xff]
        %v829 = vld [vmem:[%s1 + $0xa8] sm:$0xff]
        %v830 = vld [vmem:[%s1 + $0xb0] sm:$0xff]
        %v831 = vld [vmem:[%s1 + $0xb8] sm:$0xff]
        %v832 = vld [vmem:[%s1 + $0xc0] sm:$0xff]
        %v833 = vld [vmem:[%s1 + $0xc8] sm:$0xff]
        %v834 = vld [vmem:[%s1 + $0xd0] sm:$0xff]
        %v835 = vld [vmem:[%s1 + $0xd8] sm:$0xff]
        %v836 = vld [vmem:[%s1 + $0xe0] sm:$0xff]
        %v837 = vld [vmem:[%s1 + $0xe8] sm:$0xff]
        %v838 = vld [vmem:[%s1 + $0xf0] sm:$0xff]
        %v839 = vld [vmem:[%s1 + $0xf8] sm:$0xff]
        %v840 = vld [vmem:[%s1 + $0x100] sm:$0xff]
        %v841 = vld [vmem:[%s1 + $0x108] sm:$0xff]
        %v842 = vld [vmem:[%s1 + $0x110] sm:$0xff]
        %v843 = vld [vmem:[%s1 + $0x118] sm:$0xff]
        %v844 = vld [vmem:[%s1 + $0x120] sm:$0xff]
        %v845 = vld [vmem:[%s1 + $0x128] sm:$0xff]
        %v846 = vld [vmem:[%s1 + $0x130] sm:$0xff]
        %v847 = vld [vmem:[%s1 + $0x138] sm:$0xff]
        %v848 = vld [vmem:[%s1 + $0x140] sm:$0xff]
        %v849 = vld [vmem:[%s1 + $0x148] sm:$0xff]
        %v850 = vld [vmem:[%s1 + $0x150] sm:$0xff]
        %v851 = vld [vmem:[%s1 + $0x158] sm:$0xff]
        %v852 = vld [vmem:[%s1 + $0x160] sm:$0xff]
        %v853 = vld [vmem:[%s1 + $0x168] sm:$0xff]
        %v854 = vld [vmem:[%s1 + $0x170] sm:$0xff]
        %v855 = vld [vmem:[%s1 + $0x178] sm:$0xff]
        %v856 = vld [vmem:[%s1 + $0x180] sm:$0xff]
        %v857 = vld [vmem:[%s1 + $0x188] sm:$0xff]
        %v858 = vld [vmem:[%s1 + $0x190] sm:$0xff]
        %v859 = vld [vmem:[%s1 + $0x198] sm:$0xff]
        %v860 = vld [vmem:[%s1 + $0x1a0] sm:$0xff]
        %v861 = vld [vmem:[%s1 + $0x1a8] sm:$0xff]
        %v862 = vld [vmem:[%s1 + $0x1b0] sm:$0xff]
        %v863 = vld [vmem:[%s1 + $0x1b8] sm:$0xff]
        %v864 = vld [vmem:[%s1 + $0x1c0] sm:$0xff]
        %v865 = vld [vmem:[%s1 + $0x1c8] sm:$0xff]
        %v866 = vld [vmem:[%s1 + $0x1d0] sm:$0xff]
        %v867 = vld [vmem:[%s1 + $0x1d8] sm:$0xff]
        %v868 = vld [vmem:[%s1 + $0x1e0] sm:$0xff]
        %v869 = vld [vmem:[%s1 + $0x1e8] sm:$0xff]
        %v870 = vld [vmem:[%s1 + $0x1f0] sm:$0xff]
        %v871 = vld [vmem:[%s1 + $0x1f8] sm:$0xff]
        %v872 = vld [vmem:[%s1 + $0x200] sm:$0xff]
        %v873 = vld [vmem:[%s1 + $0x208] sm:$0xff]
        %v874 = vld [vmem:[%s1 + $0x210] sm:$0xff]
        %v875 = vld [vmem:[%s1 + $0x218] sm:$0xff]
        %v876 = vld [vmem:[%s1 + $0x220] sm:$0xff]
        %v877 = vld [vmem:[%s1 + $0x228] sm:$0xff]
        %v878 = vld [vmem:[%s1 + $0x230] sm:$0xff]
        %v879 = vld [vmem:[%s1 + $0x238] sm:$0xff]
        %v880 = vld [vmem:[%s1 + $0x240] sm:$0xff]
        %v881 = vld [vmem:[%s1 + $0x248] sm:$0xff]
        %v882 = vld [vmem:[%s1 + $0x250] sm:$0xff]
        %v883 = vld [vmem:[%s1 + $0x258] sm:$0xff]
        %v884 = vld [vmem:[%s1 + $0x260] sm:$0xff]
        %v885 = vld [vmem:[%s1 + $0x268] sm:$0xff]
        %v886 = vld [vmem:[%s1 + $0x270] sm:$0xff]
        %v887 = vld [vmem:[%s1 + $0x278] sm:$0xff]
        %v888 = vld [vmem:[%s1 + $0x280] sm:$0xff]
        %v889 = vld [vmem:[%s1 + $0x288] sm:$0xff]
        %v890 = vld [vmem:[%s1 + $0x290] sm:$0xff]
        %v891 = vld [vmem:[%s1 + $0x298] sm:$0xff]
        %v892 = vld [vmem:[%s1 + $0x2a0] sm:$0xff]
        %v893 = vld [vmem:[%s1 + $0x2a8] sm:$0xff]
        %v894 = vld [vmem:[%s1 + $0x2b0] sm:$0xff]
        %v895 = vld [vmem:[%s1 + $0x2b8] sm:$0xff]
        %v896 = vld [vmem:[%s1 + $0x2c0] sm:$0xff]
        %v897 = vld [vmem:[%s1 + $0x2c8] sm:$0xff]
        %v898 = vld [vmem:[%s1 + $0x2d0] sm:$0xff]
        %v899 = vld [vmem:[%s1 + $0x2d8] sm:$0xff]
        %v900 = vld [vmem:[%s1 + $0x2e0] sm:$0xff]
        %v901 = vld [vmem:[%s1 + $0x2e8] sm:$0xff]
        %v902 = vld [vmem:[%s1 + $0x2f0] sm:$0xff]
        %v903 = vld [vmem:[%s1 + $0x2f8] sm:$0xff]
        %v904 = vld [vmem:[%s1 + $0x300] sm:$0xff]
        %v905 = vld [vmem:[%s1 + $0x308] sm:$0xff]
        %v906 = vld [vmem:[%s1 + $0x310] sm:$0xff]
        %v907 = vld [vmem:[%s1 + $0x318] sm:$0xff]
        %v908 = vld [vmem:[%s1 + $0x320] sm:$0xff]
        %v909 = vld [vmem:[%s1 + $0x328] sm:$0xff]
        %v910 = vld [vmem:[%s1 + $0x330] sm:$0xff]
        %v911 = vld [vmem:[%s1 + $0x338] sm:$0xff]
        %v912 = vld [vmem:[%s1 + $0x340] sm:$0xff]
        %v913 = vld [vmem:[%s1 + $0x348] sm:$0xff]
        %v914 = vld [vmem:[%s1 + $0x350] sm:$0xff]
        %v915 = vld [vmem:[%s1 + $0x358] sm:$0xff]
        %v916 = vld [vmem:[%s1 + $0x360] sm:$0xff]
        %v917 = vld [vmem:[%s1 + $0x368] sm:$0xff]
        %v918 = vld [vmem:[%s1 + $0x370] sm:$0xff]
        %v919 = vld [vmem:[%s1 + $0x378] sm:$0xff]
        %v920 = vld [vmem:[%s1 + $0x380] sm:$0xff]
        %v921 = vld [vmem:[%s1 + $0x388] sm:$0xff]
        %v922 = vld [vmem:[%s1 + $0x390] sm:$0xff]
        %v923 = vld [vmem:[%s1 + $0x398] sm:$0xff]
        %v924 = vld [vmem:[%s1 + $0x3a0] sm:$0xff]
        %v925 = vld [vmem:[%s1 + $0x3a8] sm:$0xff]
        %v926 = vld [vmem:[%s1 + $0x3b0] sm:$0xff]
        %v927 = vld [vmem:[%s1 + $0x3b8] sm:$0xff]
        %v928 = vld [vmem:[%s1 + $0x3c0] sm:$0xff]
        %v929 = vld [vmem:[%s1 + $0x3c8] sm:$0xff]
        %v930 = vld [vmem:[%s1 + $0x3d0] sm:$0xff]
        %v931 = vld [vmem:[%s1 + $0x3d8] sm:$0xff]
        %v932 = vld [vmem:[%s1 + $0x3e0] sm:$0xff]
        %v933 = vld [vmem:[%s1 + $0x3e8] sm:$0xff]
        %v934 = vld [vmem:[%s1 + $0x3f0] sm:$0xff]
        %v935 = vld [vmem:[%s1 + $0x3f8] sm:$0xff]
        %v936 = vld [vmem:[%s1 + $0x400] sm:$0xff]
        %v937 = vld [vmem:[%s1 + $0x408] sm:$0xff]
        %v938 = vld [vmem:[%s1 + $0x410] sm:$0xff]
        %v939 = vld [vmem:[%s1 + $0x418] sm:$0xff]
        %v940 = vld [vmem:[%s1 + $0x420] sm:$0xff]
        %v941 = vld [vmem:[%s1 + $0x428] sm:$0xff]
        %v942 = vld [vmem:[%s1 + $0x430] sm:$0xff]
        %v943 = vld [vmem:[%s1 + $0x438] sm:$0xff]
        %v944 = vld [vmem:[%s1 + $0x440] sm:$0xff]
        %v945 = vld [vmem:[%s1 + $0x448] sm:$0xff]
        %v946 = vld [vmem:[%s1 + $0x450] sm:$0xff]
        %v947 = vld [vmem:[%s1 + $0x458] sm:$0xff]
        %v948 = vld [vmem:[%s1 + $0x460] sm:$0xff]
        %v949 = vld [vmem:[%s1 + $0x468] sm:$0xff]
        %v950 = vld [vmem:[%s1 + $0x470] sm:$0xff]
        %v951 = vld [vmem:[%s1 + $0x478] sm:$0xff]
        %v952 = vld [vmem:[%s2] sm:$0x3]
        %v954 = vlaneseq
        %v955 = vshrl.u32 %v954, 7
        %v956 = vsub.s32 0, %v955
        %v957 = vrot.slane %v952, %v956
        %v958 = vlaneseq
        %v959 = vshrl.u32 %v958, 7
        %v960 = vsub.s32 1, %v959
        %v961 = vrot.slane %v952, %v960
        %v1108 = vunpack.c.l.b16 %v808
        %v1109 = vunpack.c.h.b16 %v808
        %v1110 = vunpack.c.l.b16 %v809
        %v1111 = vunpack.c.h.b16 %v809
        %v1112 = vunpack.c.l.b16 %v810
        %v1113 = vunpack.c.h.b16 %v810
        %v1114 = vunpack.c.l.b16 %v811
        %v1115 = vunpack.c.h.b16 %v811
        %v1116 = vunpack.c.l.b16 %v812
        %v1117 = vunpack.c.h.b16 %v812
        %v1118 = vunpack.c.l.b16 %v813
        %v1119 = vunpack.c.h.b16 %v813
        %v1120 = vunpack.c.l.b16 %v814
        %v1121 = vunpack.c.h.b16 %v814
        %v1122 = vunpack.c.l.b16 %v815
        %v1123 = vunpack.c.h.b16 %v815
        %v1124 = vunpack.c.l.b16 %v816
        %v1125 = vunpack.c.h.b16 %v816
        %v1126 = vunpack.c.l.b16 %v817
        %v1127 = vunpack.c.h.b16 %v817
        %v1128 = vunpack.c.l.b16 %v818
        %v1129 = vunpack.c.h.b16 %v818
        %v1130 = vunpack.c.l.b16 %v819
        %v1131 = vunpack.c.h.b16 %v819
        %v1132 = vunpack.c.l.b16 %v820
        %v1133 = vunpack.c.h.b16 %v820
        %v1134 = vunpack.c.l.b16 %v821
        %v1135 = vunpack.c.h.b16 %v821
        %v1136 = vunpack.c.l.b16 %v822
        %v1137 = vunpack.c.h.b16 %v822
        %v1138 = vunpack.c.l.b16 %v823
        %v1139 = vunpack.c.h.b16 %v823
        %v1140 = vunpack.c.l.b16 %v824
        %v1141 = vunpack.c.h.b16 %v824
        %v1142 = vunpack.c.l.b16 %v825
        %v1143 = vunpack.c.h.b16 %v825
        %v1144 = vunpack.c.l.b16 %v826
        %v1145 = vunpack.c.h.b16 %v826
        %v1146 = vunpack.c.l.b16 %v827
        %v1147 = vunpack.c.h.b16 %v827
        %v1148 = vunpack.c.l.b16 %v828
        %v1149 = vunpack.c.h.b16 %v828
        %v1150 = vunpack.c.l.b16 %v829
        %v1151 = vunpack.c.h.b16 %v829
        %v1152 = vunpack.c.l.b16 %v830
        %v1153 = vunpack.c.h.b16 %v830
        %v1154 = vunpack.c.l.b16 %v831
        %v1155 = vunpack.c.h.b16 %v831
        %v1156 = vunpack.c.l.b16 %v832
        %v1157 = vunpack.c.h.b16 %v832
        %v1158 = vunpack.c.l.b16 %v833
        %v1159 = vunpack.c.h.b16 %v833
        %v1160 = vunpack.c.l.b16 %v834
        %v1161 = vunpack.c.h.b16 %v834
        %v1162 = vunpack.c.l.b16 %v835
        %v1163 = vunpack.c.h.b16 %v835
        %v1164 = vunpack.c.l.b16 %v836
        %v1165 = vunpack.c.h.b16 %v836
        %v1166 = vunpack.c.l.b16 %v837
        %v1167 = vunpack.c.h.b16 %v837
        %v1168 = vunpack.c.l.b16 %v838
        %v1169 = vunpack.c.h.b16 %v838
        %v1170 = vunpack.c.l.b16 %v839
        %v1171 = vunpack.c.h.b16 %v839
        %v1172 = vunpack.c.l.b16 %v840
        %v1173 = vunpack.c.h.b16 %v840
        %v1174 = vunpack.c.l.b16 %v841
        %v1175 = vunpack.c.h.b16 %v841
        %v1176 = vunpack.c.l.b16 %v842
        %v1177 = vunpack.c.h.b16 %v842
        %v1178 = vunpack.c.l.b16 %v843
        %v1179 = vunpack.c.h.b16 %v843
        %v1180 = vunpack.c.l.b16 %v844
        %v1181 = vunpack.c.h.b16 %v844
        %v1182 = vunpack.c.l.b16 %v845
        %v1183 = vunpack.c.h.b16 %v845
        %v1184 = vunpack.c.l.b16 %v846
        %v1185 = vunpack.c.h.b16 %v846
        %v1186 = vunpack.c.l.b16 %v847
        %v1187 = vunpack.c.h.b16 %v847
        %v1188 = vunpack.c.l.b16 %v848
        %v1189 = vunpack.c.h.b16 %v848
        %v1190 = vunpack.c.l.b16 %v849
        %v1191 = vunpack.c.h.b16 %v849
        %v1192 = vunpack.c.l.b16 %v850
        %v1193 = vunpack.c.h.b16 %v850
        %v1194 = vunpack.c.l.b16 %v851
        %v1195 = vunpack.c.h.b16 %v851
        %v1196 = vunpack.c.l.b16 %v852
        %v1197 = vunpack.c.h.b16 %v852
        %v1198 = vunpack.c.l.b16 %v853
        %v1199 = vunpack.c.h.b16 %v853
        %v1200 = vunpack.c.l.b16 %v854
        %v1201 = vunpack.c.h.b16 %v854
        %v1202 = vunpack.c.l.b16 %v855
        %v1203 = vunpack.c.h.b16 %v855
        %v1204 = vunpack.c.l.b16 %v856
        %v1205 = vunpack.c.h.b16 %v856
        %v1206 = vunpack.c.l.b16 %v857
        %v1207 = vunpack.c.h.b16 %v857
        %v1208 = vunpack.c.l.b16 %v858
        %v1209 = vunpack.c.h.b16 %v858
        %v1210 = vunpack.c.l.b16 %v859
        %v1211 = vunpack.c.h.b16 %v859
        %v1212 = vunpack.c.l.b16 %v860
        %v1213 = vunpack.c.h.b16 %v860
        %v1214 = vunpack.c.l.b16 %v861
        %v1215 = vunpack.c.h.b16 %v861
        %v1216 = vunpack.c.l.b16 %v862
        %v1217 = vunpack.c.h.b16 %v862
        %v1218 = vunpack.c.l.b16 %v863
        %v1219 = vunpack.c.h.b16 %v863
        %v1220 = vunpack.c.l.b16 %v864
        %v1221 = vunpack.c.h.b16 %v864
        %v1222 = vunpack.c.l.b16 %v865
        %v1223 = vunpack.c.h.b16 %v865
        %v1224 = vunpack.c.l.b16 %v866
        %v1225 = vunpack.c.h.b16 %v866
        %v1226 = vunpack.c.l.b16 %v867
        %v1227 = vunpack.c.h.b16 %v867
        %v1228 = vunpack.c.l.b16 %v868
        %v1229 = vunpack.c.h.b16 %v868
        %v1230 = vunpack.c.l.b16 %v869
        %v1231 = vunpack.c.h.b16 %v869
        %v1232 = vunpack.c.l.b16 %v870
        %v1233 = vunpack.c.h.b16 %v870
        %v1234 = vunpack.c.l.b16 %v871
        %v1235 = vunpack.c.h.b16 %v871
        %v1236 = vunpack.c.l.b16 %v872
        %v1237 = vunpack.c.h.b16 %v872
        %v1238 = vunpack.c.l.b16 %v873
        %v1239 = vunpack.c.h.b16 %v873
        %v1240 = vunpack.c.l.b16 %v874
        %v1241 = vunpack.c.h.b16 %v874
        %v1242 = vunpack.c.l.b16 %v875
        %v1243 = vunpack.c.h.b16 %v875
        %v1244 = vunpack.c.l.b16 %v876
        %v1245 = vunpack.c.h.b16 %v876
        %v1246 = vunpack.c.l.b16 %v877
        %v1247 = vunpack.c.h.b16 %v877
        %v1248 = vunpack.c.l.b16 %v878
        %v1249 = vunpack.c.h.b16 %v878
        %v1250 = vunpack.c.l.b16 %v879
        %v1251 = vunpack.c.h.b16 %v879
        %v1252 = vunpack.c.l.b16 %v880
        %v1253 = vunpack.c.h.b16 %v880
        %v1254 = vunpack.c.l.b16 %v881
        %v1255 = vunpack.c.h.b16 %v881
        %v1256 = vunpack.c.l.b16 %v882
        %v1257 = vunpack.c.h.b16 %v882
        %v1258 = vunpack.c.l.b16 %v883
        %v1259 = vunpack.c.h.b16 %v883
        %v1260 = vunpack.c.l.b16 %v884
        %v1261 = vunpack.c.h.b16 %v884
        %v1262 = vunpack.c.l.b16 %v885
        %v1263 = vunpack.c.h.b16 %v885
        %v1264 = vunpack.c.l.b16 %v886
        %v1265 = vunpack.c.h.b16 %v886
        %v1266 = vunpack.c.l.b16 %v887
        %v1267 = vunpack.c.h.b16 %v887
        %v1268 = vunpack.c.l.b16 %v888
        %v1269 = vunpack.c.h.b16 %v888
        %v1270 = vunpack.c.l.b16 %v889
        %v1271 = vunpack.c.h.b16 %v889
        %v1272 = vunpack.c.l.b16 %v890
        %v1273 = vunpack.c.h.b16 %v890
        %v1274 = vunpack.c.l.b16 %v891
        %v1275 = vunpack.c.h.b16 %v891
        %v1276 = vunpack.c.l.b16 %v892
        %v1277 = vunpack.c.h.b16 %v892
        %v1278 = vunpack.c.l.b16 %v893
        %v1279 = vunpack.c.h.b16 %v893
        %v1280 = vunpack.c.l.b16 %v894
        %v1281 = vunpack.c.h.b16 %v894
        %v1282 = vunpack.c.l.b16 %v895
        %v1283 = vunpack.c.h.b16 %v895
        %v1284 = vunpack.c.l.b16 %v896
        %v1285 = vunpack.c.h.b16 %v896
        %v1286 = vunpack.c.l.b16 %v897
        %v1287 = vunpack.c.h.b16 %v897
        %v1288 = vunpack.c.l.b16 %v898
        %v1289 = vunpack.c.h.b16 %v898
        %v1290 = vunpack.c.l.b16 %v899
        %v1291 = vunpack.c.h.b16 %v899
        %v1292 = vunpack.c.l.b16 %v900
        %v1293 = vunpack.c.h.b16 %v900
        %v1294 = vunpack.c.l.b16 %v901
        %v1295 = vunpack.c.h.b16 %v901
        %v1296 = vunpack.c.l.b16 %v902
        %v1297 = vunpack.c.h.b16 %v902
        %v1298 = vunpack.c.l.b16 %v903
        %v1299 = vunpack.c.h.b16 %v903
        %v1300 = vunpack.c.l.b16 %v904
        %v1301 = vunpack.c.h.b16 %v904
        %v1302 = vunpack.c.l.b16 %v905
        %v1303 = vunpack.c.h.b16 %v905
        %v1304 = vunpack.c.l.b16 %v906
        %v1305 = vunpack.c.h.b16 %v906
        %v1306 = vunpack.c.l.b16 %v907
        %v1307 = vunpack.c.h.b16 %v907
        %v1308 = vunpack.c.l.b16 %v908
        %v1309 = vunpack.c.h.b16 %v908
        %v1310 = vunpack.c.l.b16 %v909
        %v1311 = vunpack.c.h.b16 %v909
        %v1312 = vunpack.c.l.b16 %v910
        %v1313 = vunpack.c.h.b16 %v910
        %v1314 = vunpack.c.l.b16 %v911
        %v1315 = vunpack.c.h.b16 %v911
        %v1316 = vunpack.c.l.b16 %v912
        %v1317 = vunpack.c.h.b16 %v912
        %v1318 = vunpack.c.l.b16 %v913
        %v1319 = vunpack.c.h.b16 %v913
        %v1320 = vunpack.c.l.b16 %v914
        %v1321 = vunpack.c.h.b16 %v914
        %v1322 = vunpack.c.l.b16 %v915
        %v1323 = vunpack.c.h.b16 %v915
        %v1324 = vunpack.c.l.b16 %v916
        %v1325 = vunpack.c.h.b16 %v916
        %v1326 = vunpack.c.l.b16 %v917
        %v1327 = vunpack.c.h.b16 %v917
        %v1328 = vunpack.c.l.b16 %v918
        %v1329 = vunpack.c.h.b16 %v918
        %v1330 = vunpack.c.l.b16 %v919
        %v1331 = vunpack.c.h.b16 %v919
        %v1332 = vunpack.c.l.b16 %v920
        %v1333 = vunpack.c.h.b16 %v920
        %v1334 = vunpack.c.l.b16 %v921
        %v1335 = vunpack.c.h.b16 %v921
        %v1336 = vunpack.c.l.b16 %v922
        %v1337 = vunpack.c.h.b16 %v922
        %v1338 = vunpack.c.l.b16 %v923
        %v1339 = vunpack.c.h.b16 %v923
        %v1340 = vunpack.c.l.b16 %v924
        %v1341 = vunpack.c.h.b16 %v924
        %v1342 = vunpack.c.l.b16 %v925
        %v1343 = vunpack.c.h.b16 %v925
        %v1344 = vunpack.c.l.b16 %v926
        %v1345 = vunpack.c.h.b16 %v926
        %v1346 = vunpack.c.l.b16 %v927
        %v1347 = vunpack.c.h.b16 %v927
        %v1348 = vunpack.c.l.b16 %v928
        %v1349 = vunpack.c.h.b16 %v928
        %v1350 = vunpack.c.l.b16 %v929
        %v1351 = vunpack.c.h.b16 %v929
        %v1352 = vunpack.c.l.b16 %v930
        %v1353 = vunpack.c.h.b16 %v930
        %v1354 = vunpack.c.l.b16 %v931
        %v1355 = vunpack.c.h.b16 %v931
        %v1356 = vunpack.c.l.b16 %v932
        %v1357 = vunpack.c.h.b16 %v932
        %v1358 = vunpack.c.l.b16 %v933
        %v1359 = vunpack.c.h.b16 %v933
        %v1360 = vunpack.c.l.b16 %v934
        %v1361 = vunpack.c.h.b16 %v934
        %v1362 = vunpack.c.l.b16 %v935
        %v1363 = vunpack.c.h.b16 %v935
        %v1364 = vunpack.c.l.b16 %v936
        %v1365 = vunpack.c.h.b16 %v936
        %v1366 = vunpack.c.l.b16 %v937
        %v1367 = vunpack.c.h.b16 %v937
        %v1368 = vunpack.c.l.b16 %v938
        %v1369 = vunpack.c.h.b16 %v938
        %v1370 = vunpack.c.l.b16 %v939
        %v1371 = vunpack.c.h.b16 %v939
        %v1372 = vunpack.c.l.b16 %v940
        %v1373 = vunpack.c.h.b16 %v940
        %v1374 = vunpack.c.l.b16 %v941
        %v1375 = vunpack.c.h.b16 %v941
        %v1376 = vunpack.c.l.b16 %v942
        %v1377 = vunpack.c.h.b16 %v942
        %v1378 = vunpack.c.l.b16 %v943
        %v1379 = vunpack.c.h.b16 %v943
        %v1380 = vunpack.c.l.b16 %v944
        %v1381 = vunpack.c.h.b16 %v944
        %v1382 = vunpack.c.l.b16 %v945
        %v1383 = vunpack.c.h.b16 %v945
        %v1384 = vunpack.c.l.b16 %v946
        %v1385 = vunpack.c.h.b16 %v946
        %v1386 = vunpack.c.l.b16 %v947
        %v1387 = vunpack.c.h.b16 %v947
        %v1388 = vunpack.c.l.b16 %v948
        %v1389 = vunpack.c.h.b16 %v948
        %v1390 = vunpack.c.l.b16 %v949
        %v1391 = vunpack.c.h.b16 %v949
        %v1392 = vunpack.c.l.b16 %v950
        %v1393 = vunpack.c.h.b16 %v950
        %v1394 = vunpack.c.l.b16 %v951
        %v1395 = vunpack.c.h.b16 %v951
        %v1396 = vpack.c.b16 %v1110, %v1108
        %v1397 = vpack.c.b16 %v1111, %v1109
        %v1398 = vpack.c.b16 %v1114, %v1112
        %v1399 = vpack.c.b16 %v1115, %v1113
        %v1400 = vpack.c.b16 %v1118, %v1116
        %v1401 = vpack.c.b16 %v1119, %v1117
        %v1402 = vpack.c.b16 %v1122, %v1120
        %v1403 = vpack.c.b16 %v1123, %v1121
        %v1404 = vpack.c.b16 %v1126, %v1124
        %v1405 = vpack.c.b16 %v1127, %v1125
        %v1406 = vpack.c.b16 %v1130, %v1128
        %v1407 = vpack.c.b16 %v1131, %v1129
        %v1408 = vpack.c.b16 %v1134, %v1132
        %v1409 = vpack.c.b16 %v1135, %v1133
        %v1410 = vpack.c.b16 %v1138, %v1136
        %v1411 = vpack.c.b16 %v1139, %v1137
        %v1412 = vpack.c.b16 %v1142, %v1140
        %v1413 = vpack.c.b16 %v1143, %v1141
        %v1414 = vpack.c.b16 %v1146, %v1144
        %v1415 = vpack.c.b16 %v1147, %v1145
        %v1416 = vpack.c.b16 %v1150, %v1148
        %v1417 = vpack.c.b16 %v1151, %v1149
        %v1418 = vpack.c.b16 %v1154, %v1152
        %v1419 = vpack.c.b16 %v1155, %v1153
        %v1420 = vpack.c.b16 %v1158, %v1156
        %v1421 = vpack.c.b16 %v1159, %v1157
        %v1422 = vpack.c.b16 %v1162, %v1160
        %v1423 = vpack.c.b16 %v1163, %v1161
        %v1424 = vpack.c.b16 %v1166, %v1164
        %v1425 = vpack.c.b16 %v1167, %v1165
        %v1426 = vpack.c.b16 %v1170, %v1168
        %v1427 = vpack.c.b16 %v1171, %v1169
        %v1428 = vpack.c.b16 %v1174, %v1172
        %v1429 = vpack.c.b16 %v1175, %v1173
        %v1430 = vpack.c.b16 %v1178, %v1176
        %v1431 = vpack.c.b16 %v1179, %v1177
        %v1432 = vpack.c.b16 %v1182, %v1180
        %v1433 = vpack.c.b16 %v1183, %v1181
        %v1434 = vpack.c.b16 %v1186, %v1184
        %v1435 = vpack.c.b16 %v1187, %v1185
        %v1436 = vpack.c.b16 %v1190, %v1188
        %v1437 = vpack.c.b16 %v1191, %v1189
        %v1438 = vpack.c.b16 %v1194, %v1192
        %v1439 = vpack.c.b16 %v1195, %v1193
        %v1440 = vpack.c.b16 %v1198, %v1196
        %v1441 = vpack.c.b16 %v1199, %v1197
        %v1442 = vpack.c.b16 %v1202, %v1200
        %v1443 = vpack.c.b16 %v1203, %v1201
        %v1444 = vpack.c.b16 %v1206, %v1204
        %v1445 = vpack.c.b16 %v1207, %v1205
        %v1446 = vpack.c.b16 %v1210, %v1208
        %v1447 = vpack.c.b16 %v1211, %v1209
        %v1448 = vpack.c.b16 %v1214, %v1212
        %v1449 = vpack.c.b16 %v1215, %v1213
        %v1450 = vpack.c.b16 %v1218, %v1216
        %v1451 = vpack.c.b16 %v1219, %v1217
        %v1452 = vpack.c.b16 %v1222, %v1220
        %v1453 = vpack.c.b16 %v1223, %v1221
        %v1454 = vpack.c.b16 %v1226, %v1224
        %v1455 = vpack.c.b16 %v1227, %v1225
        %v1456 = vpack.c.b16 %v1230, %v1228
        %v1457 = vpack.c.b16 %v1231, %v1229
        %v1458 = vpack.c.b16 %v1234, %v1232
        %v1459 = vpack.c.b16 %v1235, %v1233
        %v1460 = vpack.c.b16 %v1238, %v1236
        %v1461 = vpack.c.b16 %v1239, %v1237
        %v1462 = vpack.c.b16 %v1242, %v1240
        %v1463 = vpack.c.b16 %v1243, %v1241
        %v1464 = vpack.c.b16 %v1246, %v1244
        %v1465 = vpack.c.b16 %v1247, %v1245
        %v1466 = vpack.c.b16 %v1250, %v1248
        %v1467 = vpack.c.b16 %v1251, %v1249
        %v1468 = vpack.c.b16 %v1254, %v1252
        %v1469 = vpack.c.b16 %v1255, %v1253
        %v1470 = vpack.c.b16 %v1258, %v1256
        %v1471 = vpack.c.b16 %v1259, %v1257
        %v1472 = vpack.c.b16 %v1262, %v1260
        %v1473 = vpack.c.b16 %v1263, %v1261
        %v1474 = vpack.c.b16 %v1266, %v1264
        %v1475 = vpack.c.b16 %v1267, %v1265
        %v1476 = vpack.c.b16 %v1270, %v1268
        %v1477 = vpack.c.b16 %v1271, %v1269
        %v1478 = vpack.c.b16 %v1274, %v1272
        %v1479 = vpack.c.b16 %v1275, %v1273
        %v1480 = vpack.c.b16 %v1278, %v1276
        %v1481 = vpack.c.b16 %v1279, %v1277
        %v1482 = vpack.c.b16 %v1282, %v1280
        %v1483 = vpack.c.b16 %v1283, %v1281
        %v1484 = vpack.c.b16 %v1286, %v1284
        %v1485 = vpack.c.b16 %v1287, %v1285
        %v1486 = vpack.c.b16 %v1290, %v1288
        %v1487 = vpack.c.b16 %v1291, %v1289
        %v1488 = vpack.c.b16 %v1294, %v1292
        %v1489 = vpack.c.b16 %v1295, %v1293
        %v1490 = vpack.c.b16 %v1298, %v1296
        %v1491 = vpack.c.b16 %v1299, %v1297
        %v1492 = vpack.c.b16 %v1302, %v1300
        %v1493 = vpack.c.b16 %v1303, %v1301
        %v1494 = vpack.c.b16 %v1306, %v1304
        %v1495 = vpack.c.b16 %v1307, %v1305
        %v1496 = vpack.c.b16 %v1310, %v1308
        %v1497 = vpack.c.b16 %v1311, %v1309
        %v1498 = vpack.c.b16 %v1314, %v1312
        %v1499 = vpack.c.b16 %v1315, %v1313
        %v1500 = vpack.c.b16 %v1318, %v1316
        %v1501 = vpack.c.b16 %v1319, %v1317
        %v1502 = vpack.c.b16 %v1322, %v1320
        %v1503 = vpack.c.b16 %v1323, %v1321
        %v1504 = vpack.c.b16 %v1326, %v1324
        %v1505 = vpack.c.b16 %v1327, %v1325
        %v1506 = vpack.c.b16 %v1330, %v1328
        %v1507 = vpack.c.b16 %v1331, %v1329
        %v1508 = vpack.c.b16 %v1334, %v1332
        %v1509 = vpack.c.b16 %v1335, %v1333
        %v1510 = vpack.c.b16 %v1338, %v1336
        %v1511 = vpack.c.b16 %v1339, %v1337
        %v1512 = vpack.c.b16 %v1342, %v1340
        %v1513 = vpack.c.b16 %v1343, %v1341
        %v1514 = vpack.c.b16 %v1346, %v1344
        %v1515 = vpack.c.b16 %v1347, %v1345
        %v1516 = vpack.c.b16 %v1350, %v1348
        %v1517 = vpack.c.b16 %v1351, %v1349
        %v1518 = vpack.c.b16 %v1354, %v1352
        %v1519 = vpack.c.b16 %v1355, %v1353
        %v1520 = vpack.c.b16 %v1358, %v1356
        %v1521 = vpack.c.b16 %v1359, %v1357
        %v1522 = vpack.c.b16 %v1362, %v1360
        %v1523 = vpack.c.b16 %v1363, %v1361
        %v1524 = vpack.c.b16 %v1366, %v1364
        %v1525 = vpack.c.b16 %v1367, %v1365
        %v1526 = vpack.c.b16 %v1370, %v1368
        %v1527 = vpack.c.b16 %v1371, %v1369
        %v1528 = vpack.c.b16 %v1374, %v1372
        %v1529 = vpack.c.b16 %v1375, %v1373
        %v1530 = vpack.c.b16 %v1378, %v1376
        %v1531 = vpack.c.b16 %v1379, %v1377
        %v1532 = vpack.c.b16 %v1382, %v1380
        %v1533 = vpack.c.b16 %v1383, %v1381
        %v1534 = vpack.c.b16 %v1386, %v1384
        %v1535 = vpack.c.b16 %v1387, %v1385
        %v1536 = vpack.c.b16 %v1390, %v1388
        %v1537 = vpack.c.b16 %v1391, %v1389
        %v1538 = vpack.c.b16 %v1394, %v1392
        %v1539 = vpack.c.b16 %v1395, %v1393
        %1684 = vmatprep.subr.bf16.mxu0 %v1397
        %1685 = vmatpush1.bf16.msra.mxu0 %v1396
        %1686 = vmatprep.subr.bf16.mxu0 %v1399
        %1687 = vmatpush1.bf16.msra.mxu0 %v1398
        %1688 = vmatprep.subr.bf16.mxu0 %v1401
        %1689 = vmatpush1.bf16.msra.mxu0 %v1400
        %1690 = vmatprep.subr.bf16.mxu0 %v1403
        %1691 = vmatpush1.bf16.msra.mxu0 %v1402
        %1692 = vmatprep.subr.bf16.mxu0 %v1405
        %1693 = vmatpush1.bf16.msra.mxu0 %v1404
        %1694 = vmatprep.subr.bf16.mxu0 %v1407
        %1695 = vmatpush1.bf16.msra.mxu0 %v1406
        %1696 = vmatprep.subr.bf16.mxu0 %v1409
        %1697 = vmatpush1.bf16.msra.mxu0 %v1408
        %1698 = vmatprep.subr.bf16.mxu0 %v1411
        %1699 = vmatpush1.bf16.msra.mxu0 %v1410
        %1700 = vmatprep.subr.bf16.mxu0 %v1413
        %1701 = vmatpush1.bf16.msra.mxu0 %v1412
        %1702 = vmatprep.subr.bf16.mxu0 %v1415
        %1703 = vmatpush1.bf16.msra.mxu0 %v1414
        %1704 = vmatprep.subr.bf16.mxu0 %v1417
        %1705 = vmatpush1.bf16.msra.mxu0 %v1416
        %1706 = vmatprep.subr.bf16.mxu0 %v1419
        %1707 = vmatpush1.bf16.msra.mxu0 %v1418
        %1708 = vmatprep.subr.bf16.mxu0 %v1421
        %1709 = vmatpush1.bf16.msra.mxu0 %v1420
        %1710 = vmatprep.subr.bf16.mxu0 %v1423
        %1711 = vmatpush1.bf16.msra.mxu0 %v1422
        %1712 = vmatprep.subr.bf16.mxu0 %v1425
        %1713 = vmatpush1.bf16.msra.mxu0 %v1424
        %1714 = vmatprep.subr.bf16.mxu0 %v1427
        %1715 = vmatpush1.bf16.msra.mxu0 %v1426
        %1716 = vmatprep.mubr.bf16.mxu0 %v656
        %1717 = vmatmul.mubr.bf16.gmra.mrb[0].mxu0 %v632
        %v1718 = vpop.f32.mrb[0].mxu0
        %v1719 = vadd.f32 %v957, %v1718
        %v1720 = vpop.f32.mrb[0].mxu0
        %v1721 = vadd.f32 %v961, %v1720
        %v1722 = vpop.f32.mrb[0].mxu0
        %v1723 = vadd.f32 %v957, %v1722
        %v1724 = vpop.f32.mrb[0].mxu0
        %v1725 = vadd.f32 %v961, %v1724
        %1726 = vmatprep.mubr.bf16.mxu0 %v657
        %1727 = vmatmul.mubr.bf16.gmra.mrb[0].mxu0 %v633
        %v1728 = vpop.f32.mrb[0].mxu0
        %v1729 = vadd.f32 %v957, %v1728
        %v1730 = vpop.f32.mrb[0].mxu0
        %v1731 = vadd.f32 %v961, %v1730
        %v1732 = vpop.f32.mrb[0].mxu0
        %v1733 = vadd.f32 %v957, %v1732
        %v1734 = vpop.f32.mrb[0].mxu0
        %v1735 = vadd.f32 %v961, %v1734
        %1736 = vmatprep.mubr.bf16.mxu0 %v658
        %1737 = vmatmul.mubr.bf16.gmra.mrb[0].mxu0 %v634
        %v1738 = vpop.f32.mrb[0].mxu0
        %v1739 = vadd.f32 %v957, %v1738
        %v1740 = vpop.f32.mrb[0].mxu0
        %v1741 = vadd.f32 %v961, %v1740
        %v1742 = vpop.f32.mrb[0].mxu0
        %v1743 = vadd.f32 %v957, %v1742
        %v1744 = vpop.f32.mrb[0].mxu0
        %v1745 = vadd.f32 %v961, %v1744
        %1746 = vmatprep.mubr.bf16.mxu0 %v659
        %1747 = vmatmul.mubr.bf16.gmra.mrb[0].mxu0 %v635
        %v1748 = vpop.f32.mrb[0].mxu0
        %v1749 = vadd.f32 %v957, %v1748
        %v1750 = vpop.f32.mrb[0].mxu0
        %v1751 = vadd.f32 %v961, %v1750
        %v1752 = vpop.f32.mrb[0].mxu0
        %v1753 = vadd.f32 %v957, %v1752
        %v1754 = vpop.f32.mrb[0].mxu0
        %v1755 = vadd.f32 %v961, %v1754
        %1756 = vdwg.mxu0
        %1757 = vmatprep.subr.bf16.mxu0 %v1429
        %1758 = vmatpush1.bf16.msra.mxu0 %v1428
        %1759 = vmatprep.subr.bf16.mxu0 %v1431
        %1760 = vmatpush1.bf16.msra.mxu0 %v1430
        %1761 = vmatprep.subr.bf16.mxu0 %v1433
        %1762 = vmatpush1.bf16.msra.mxu0 %v1432
        %1763 = vmatprep.subr.bf16.mxu0 %v1435
        %1764 = vmatpush1.bf16.msra.mxu0 %v1434
        %1765 = vmatprep.subr.bf16.mxu0 %v1437
        %1766 = vmatpush1.bf16.msra.mxu0 %v1436
        %1767 = vmatprep.subr.bf16.mxu0 %v1439
        %1768 = vmatpush1.bf16.msra.mxu0 %v1438
        %1769 = vmatprep.subr.bf16.mxu0 %v1441
        %1770 = vmatpush1.bf16.msra.mxu0 %v1440
        %1771 = vmatprep.subr.bf16.mxu0 %v1443
        %1772 = vmatpush1.bf16.msra.mxu0 %v1442
        %1773 = vmatprep.subr.bf16.mxu0 %v1445
        %1774 = vmatpush1.bf16.msra.mxu0 %v1444
        %1775 = vmatprep.subr.bf16.mxu0 %v1447
        %1776 = vmatpush1.bf16.msra.mxu0 %v1446
        %1777 = vmatprep.subr.bf16.mxu0 %v1449
        %1778 = vmatpush1.bf16.msra.mxu0 %v1448
        %1779 = vmatprep.subr.bf16.mxu0 %v1451
        %1780 = vmatpush1.bf16.msra.mxu0 %v1450
        %1781 = vmatprep.subr.bf16.mxu0 %v1453
        %1782 = vmatpush1.bf16.msra.mxu0 %v1452
        %1783 = vmatprep.subr.bf16.mxu0 %v1455
        %1784 = vmatpush1.bf16.msra.mxu0 %v1454
        %1785 = vmatprep.subr.bf16.mxu0 %v1457
        %1786 = vmatpush1.bf16.msra.mxu0 %v1456
        %1787 = vmatprep.subr.bf16.mxu0 %v1459
        %1788 = vmatpush1.bf16.msra.mxu0 %v1458
        %1789 = vmatprep.mubr.bf16.mxu0 %v696
        %1790 = vmatmul.mubr.bf16.gmra.mrb[0].mxu0 %v672
        %v1791 = vpop.f32.mrb[0].mxu0
        %v1792 = vadd.f32 %v1719, %v1791
        %v1793 = vpop.f32.mrb[0].mxu0
        %v1794 = vadd.f32 %v1721, %v1793
        %v1795 = vpop.f32.mrb[0].mxu0
        %v1796 = vadd.f32 %v1723, %v1795
        %v1797 = vpop.f32.mrb[0].mxu0
        %v1798 = vadd.f32 %v1725, %v1797
        %1799 = vmatprep.mubr.bf16.mxu0 %v697
        %1800 = vmatmul.mubr.bf16.gmra.mrb[0].mxu0 %v673
        %v1801 = vpop.f32.mrb[0].mxu0
        %v1802 = vadd.f32 %v1729, %v1801
        %v1803 = vpop.f32.mrb[0].mxu0
        %v1804 = vadd.f32 %v1731, %v1803
        %v1805 = vpop.f32.mrb[0].mxu0
        %v1806 = vadd.f32 %v1733, %v1805
        %v1807 = vpop.f32.mrb[0].mxu0
        %v1808 = vadd.f32 %v1735, %v1807
        %1809 = vmatprep.mubr.bf16.mxu0 %v698
        %1810 = vmatmul.mubr.bf16.gmra.mrb[0].mxu0 %v674
        %v1811 = vpop.f32.mrb[0].mxu0
        %v1812 = vadd.f32 %v1739, %v1811
        %v1813 = vpop.f32.mrb[0].mxu0
        %v1814 = vadd.f32 %v1741, %v1813
        %v1815 = vpop.f32.mrb[0].mxu0
        %v1816 = vadd.f32 %v1743, %v1815
        %v1817 = vpop.f32.mrb[0].mxu0
        %v1818 = vadd.f32 %v1745, %v1817
        %1819 = vmatprep.mubr.bf16.mxu0 %v699
        %1820 = vmatmul.mubr.bf16.gmra.mrb[0].mxu0 %v675
        %v1821 = vpop.f32.mrb[0].mxu0
        %v1822 = vadd.f32 %v1749, %v1821
        %v1823 = vpop.f32.mrb[0].mxu0
        %v1824 = vadd.f32 %v1751, %v1823
        %v1825 = vpop.f32.mrb[0].mxu0
        %v1826 = vadd.f32 %v1753, %v1825
        %v1827 = vpop.f32.mrb[0].mxu0
        %v1828 = vadd.f32 %v1755, %v1827
        %1829 = vdwg.mxu0
        %1830 = vmatprep.subr.bf16.mxu0 %v1461
        %1831 = vmatpush1.bf16.msra.mxu0 %v1460
        %1832 = vmatprep.subr.bf16.mxu0 %v1463
        %1833 = vmatpush1.bf16.msra.mxu0 %v1462
        %1834 = vmatprep.subr.bf16.mxu0 %v1465
        %1835 = vmatpush1.bf16.msra.mxu0 %v1464
        %1836 = vmatprep.subr.bf16.mxu0 %v1467
        %1837 = vmatpush1.bf16.msra.mxu0 %v1466
        %1838 = vmatprep.subr.bf16.mxu0 %v1469
        %1839 = vmatpush1.bf16.msra.mxu0 %v1468
        %1840 = vmatprep.subr.bf16.mxu0 %v1471
        %1841 = vmatpush1.bf16.msra.mxu0 %v1470
        %1842 = vmatprep.subr.bf16.mxu0 %v1473
        %1843 = vmatpush1.bf16.msra.mxu0 %v1472
        %1844 = vmatprep.subr.bf16.mxu0 %v1475
        %1845 = vmatpush1.bf16.msra.mxu0 %v1474
        %1846 = vmatprep.subr.bf16.mxu0 %v1477
        %1847 = vmatpush1.bf16.msra.mxu0 %v1476
        %1848 = vmatprep.subr.bf16.mxu0 %v1479
        %1849 = vmatpush1.bf16.msra.mxu0 %v1478
        %1850 = vmatprep.subr.bf16.mxu0 %v1481
        %1851 = vmatpush1.bf16.msra.mxu0 %v1480
        %1852 = vmatprep.subr.bf16.mxu0 %v1483
        %1853 = vmatpush1.bf16.msra.mxu0 %v1482
        %1854 = vmatprep.subr.bf16.mxu0 %v1485
        %1855 = vmatpush1.bf16.msra.mxu0 %v1484
        %1856 = vmatprep.subr.bf16.mxu0 %v1487
        %1857 = vmatpush1.bf16.msra.mxu0 %v1486
        %1858 = vmatprep.subr.bf16.mxu0 %v1489
        %1859 = vmatpush1.bf16.msra.mxu0 %v1488
        %1860 = vmatprep.subr.bf16.mxu0 %v1491
        %1861 = vmatpush1.bf16.msra.mxu0 %v1490
        %1862 = vmatprep.mubr.bf16.mxu0 %v736
        %1863 = vmatmul.mubr.bf16.gmra.mrb[0].mxu0 %v720
        %v1864 = vpop.f32.mrb[0].mxu0
        %v1865 = vadd.f32 %v1792, %v1864
        %v1866 = vpop.f32.mrb[0].mxu0
        %v1867 = vadd.f32 %v1794, %v1866
        %v1868 = vpop.f32.mrb[0].mxu0
        %v1869 = vadd.f32 %v1796, %v1868
        %v1870 = vpop.f32.mrb[0].mxu0
        %v1871 = vadd.f32 %v1798, %v1870
        %1872 = vmatprep.mubr.bf16.mxu0 %v737
        %1873 = vmatmul.mubr.bf16.gmra.mrb[0].mxu0 %v721
        %v1874 = vpop.f32.mrb[0].mxu0
        %v1875 = vadd.f32 %v1802, %v1874
        %v1876 = vpop.f32.mrb[0].mxu0
        %v1877 = vadd.f32 %v1804, %v1876
        %v1878 = vpop.f32.mrb[0].mxu0
        %v1879 = vadd.f32 %v1806, %v1878
        %v1880 = vpop.f32.mrb[0].mxu0
        %v1881 = vadd.f32 %v1808, %v1880
        %1882 = vmatprep.mubr.bf16.mxu0 %v738
        %1883 = vmatmul.mubr.bf16.gmra.mrb[0].mxu0 %v722
        %v1884 = vpop.f32.mrb[0].mxu0
        %v1885 = vadd.f32 %v1812, %v1884
        %v1886 = vpop.f32.mrb[0].mxu0
        %v1887 = vadd.f32 %v1814, %v1886
        %v1888 = vpop.f32.mrb[0].mxu0
        %v1889 = vadd.f32 %v1816, %v1888
        %v1890 = vpop.f32.mrb[0].mxu0
        %v1891 = vadd.f32 %v1818, %v1890
        %1892 = vmatprep.mubr.bf16.mxu0 %v739
        %1893 = vmatmul.mubr.bf16.gmra.mrb[0].mxu0 %v723
        %v1894 = vpop.f32.mrb[0].mxu0
        %v1895 = vadd.f32 %v1822, %v1894
        %v1896 = vpop.f32.mrb[0].mxu0
        %v1897 = vadd.f32 %v1824, %v1896
        %v1898 = vpop.f32.mrb[0].mxu0
        %v1899 = vadd.f32 %v1826, %v1898
        %v1900 = vpop.f32.mrb[0].mxu0
        %v1901 = vadd.f32 %v1828, %v1900
        %1902 = vdwg.mxu0
        %1903 = vmatprep.subr.bf16.mxu0 %v1493
        %1904 = vmatpush1.bf16.msra.mxu0 %v1492
        %1905 = vmatprep.subr.bf16.mxu0 %v1495
        %1906 = vmatpush1.bf16.msra.mxu0 %v1494
        %1907 = vmatprep.subr.bf16.mxu0 %v1497
        %1908 = vmatpush1.bf16.msra.mxu0 %v1496
        %1909 = vmatprep.subr.bf16.mxu0 %v1499
        %1910 = vmatpush1.bf16.msra.mxu0 %v1498
        %1911 = vmatprep.subr.bf16.mxu0 %v1501
        %1912 = vmatpush1.bf16.msra.mxu0 %v1500
        %1913 = vmatprep.subr.bf16.mxu0 %v1503
        %1914 = vmatpush1.bf16.msra.mxu0 %v1502
        %1915 = vmatprep.subr.bf16.mxu0 %v1505
        %1916 = vmatpush1.bf16.msra.mxu0 %v1504
        %1917 = vmatprep.subr.bf16.mxu0 %v1507
        %1918 = vmatpush1.bf16.msra.mxu0 %v1506
        %1919 = vmatprep.subr.bf16.mxu0 %v1509
        %1920 = vmatpush1.bf16.msra.mxu0 %v1508
        %1921 = vmatprep.subr.bf16.mxu0 %v1511
        %1922 = vmatpush1.bf16.msra.mxu0 %v1510
        %1923 = vmatprep.subr.bf16.mxu0 %v1513
        %1924 = vmatpush1.bf16.msra.mxu0 %v1512
        %1925 = vmatprep.subr.bf16.mxu0 %v1515
        %1926 = vmatpush1.bf16.msra.mxu0 %v1514
        %1927 = vmatprep.subr.bf16.mxu0 %v1517
        %1928 = vmatpush1.bf16.msra.mxu0 %v1516
        %1929 = vmatprep.subr.bf16.mxu0 %v1519
        %1930 = vmatpush1.bf16.msra.mxu0 %v1518
        %1931 = vmatprep.subr.bf16.mxu0 %v1521
        %1932 = vmatpush1.bf16.msra.mxu0 %v1520
        %1933 = vmatprep.subr.bf16.mxu0 %v1523
        %1934 = vmatpush1.bf16.msra.mxu0 %v1522
        %1935 = vmatprep.mubr.bf16.mxu0 %v784
        %1936 = vmatmul.mubr.bf16.gmra.mrb[0].mxu0 %v760
        %v1937 = vpop.f32.mrb[0].mxu0
        %v1938 = vadd.f32 %v1865, %v1937
        %v1939 = vpop.f32.mrb[0].mxu0
        %v1940 = vadd.f32 %v1867, %v1939
        %v1941 = vpop.f32.mrb[0].mxu0
        %v1942 = vadd.f32 %v1869, %v1941
        %v1943 = vpop.f32.mrb[0].mxu0
        %v1944 = vadd.f32 %v1871, %v1943
        %1945 = vmatprep.mubr.bf16.mxu0 %v785
        %1946 = vmatmul.mubr.bf16.gmra.mrb[0].mxu0 %v761
        %v1947 = vpop.f32.mrb[0].mxu0
        %v1948 = vadd.f32 %v1875, %v1947
        %v1949 = vpop.f32.mrb[0].mxu0
        %v1950 = vadd.f32 %v1877, %v1949
        %v1951 = vpop.f32.mrb[0].mxu0
        %v1952 = vadd.f32 %v1879, %v1951
        %v1953 = vpop.f32.mrb[0].mxu0
        %v1954 = vadd.f32 %v1881, %v1953
        %1955 = vmatprep.mubr.bf16.mxu0 %v786
        %1956 = vmatmul.mubr.bf16.gmra.mrb[0].mxu0 %v762
        %v1957 = vpop.f32.mrb[0].mxu0
        %v1958 = vadd.f32 %v1885, %v1957
        %v1959 = vpop.f32.mrb[0].mxu0
        %v1960 = vadd.f32 %v1887, %v1959
        %v1961 = vpop.f32.mrb[0].mxu0
        %v1962 = vadd.f32 %v1889, %v1961
        %v1963 = vpop.f32.mrb[0].mxu0
        %v1964 = vadd.f32 %v1891, %v1963
        %1965 = vmatprep.mubr.bf16.mxu0 %v787
        %1966 = vmatmul.mubr.bf16.gmra.mrb[0].mxu0 %v763
        %v1967 = vpop.f32.mrb[0].mxu0
        %v1968 = vadd.f32 %v1895, %v1967
        %v1969 = vpop.f32.mrb[0].mxu0
        %v1970 = vadd.f32 %v1897, %v1969
        %v1971 = vpop.f32.mrb[0].mxu0
        %v1972 = vadd.f32 %v1899, %v1971
        %v1973 = vpop.f32.mrb[0].mxu0
        %v1974 = vadd.f32 %v1901, %v1973
        %1975 = vdwg.mxu0
        %1976 = vmatprep.subr.bf16.mxu0 %v1525
        %1977 = vmatpush1.bf16.msra.mxu0 %v1524
        %1978 = vmatprep.subr.bf16.mxu0 %v1527
        %1979 = vmatpush1.bf16.msra.mxu0 %v1526
        %1980 = vmatprep.subr.bf16.mxu0 %v1529
        %1981 = vmatpush1.bf16.msra.mxu0 %v1528
        %1982 = vmatprep.subr.bf16.mxu0 %v1531
        %1983 = vmatpush1.bf16.msra.mxu0 %v1530
        %1984 = vmatprep.subr.bf16.mxu0 %v1533
        %1985 = vmatpush1.bf16.msra.mxu0 %v1532
        %1986 = vmatprep.subr.bf16.mxu0 %v1535
        %1987 = vmatpush1.bf16.msra.mxu0 %v1534
        %1988 = vmatprep.subr.bf16.mxu0 %v1537
        %1989 = vmatpush1.bf16.msra.mxu0 %v1536
        %1990 = vmatprep.subr.bf16.mxu0 %v1539
        %1991 = vmatpush1.bf16.msra.mxu0 %v1538
        %1992 = vmatprep.subr.bf16.mxu0 0
        %1993 = vmatpush1.bf16.msra.mxu0 0
        %1994 = vmatprep.subr.bf16.mxu0 0
        %1995 = vmatpush1.bf16.msra.mxu0 0
        %1996 = vmatprep.subr.bf16.mxu0 0
        %1997 = vmatpush1.bf16.msra.mxu0 0
        %1998 = vmatprep.subr.bf16.mxu0 0
        %1999 = vmatpush1.bf16.msra.mxu0 0
        %2000 = vmatprep.subr.bf16.mxu0 0
        %2001 = vmatpush1.bf16.msra.mxu0 0
        %2002 = vmatprep.subr.bf16.mxu0 0
        %2003 = vmatpush1.bf16.msra.mxu0 0
        %2004 = vmatprep.subr.bf16.mxu0 0
        %2005 = vmatpush1.bf16.msra.mxu0 0
        %2006 = vmatprep.subr.bf16.mxu0 0
        %2007 = vmatpush1.bf16.msra.mxu0 0
        %2008 = vmatprep.mubr.bf16.mxu0 0
        %2009 = vmatmul.mubr.bf16.gmra.mrb[0].mxu0 %v800
        %v2010 = vpop.f32.mrb[0].mxu0
        %v2011 = vadd.f32 %v1938, %v2010
        %v2012 = vpop.f32.mrb[0].mxu0
        %v2013 = vadd.f32 %v1940, %v2012
        %v2014 = vpop.f32.mrb[0].mxu0
        %v2015 = vadd.f32 %v1942, %v2014
        %v2016 = vpop.f32.mrb[0].mxu0
        %v2017 = vadd.f32 %v1944, %v2016
        %2018 = vmatprep.mubr.bf16.mxu0 0
        %2019 = vmatmul.mubr.bf16.gmra.mrb[0].mxu0 %v801
        %v2020 = vpop.f32.mrb[0].mxu0
        %v2021 = vadd.f32 %v1948, %v2020
        %v2022 = vpop.f32.mrb[0].mxu0
        %v2023 = vadd.f32 %v1950, %v2022
        %v2024 = vpop.f32.mrb[0].mxu0
        %v2025 = vadd.f32 %v1952, %v2024
        %v2026 = vpop.f32.mrb[0].mxu0
        %v2027 = vadd.f32 %v1954, %v2026
        %2028 = vmatprep.mubr.bf16.mxu0 0
        %2029 = vmatmul.mubr.bf16.gmra.mrb[0].mxu0 %v802
        %v2030 = vpop.f32.mrb[0].mxu0
        %v2031 = vadd.f32 %v1958, %v2030
        %v2032 = vpop.f32.mrb[0].mxu0
        %v2033 = vadd.f32 %v1960, %v2032
        %v2034 = vpop.f32.mrb[0].mxu0
        %v2035 = vadd.f32 %v1962, %v2034
        %v2036 = vpop.f32.mrb[0].mxu0
        %v2037 = vadd.f32 %v1964, %v2036
        %2038 = vmatprep.mubr.bf16.mxu0 0
        %2039 = vmatmul.mubr.bf16.gmra.mrb[0].mxu0 %v803
        %v2040 = vpop.f32.mrb[0].mxu0
        %v2041 = vadd.f32 %v1968, %v2040
        %v2042 = vpop.f32.mrb[0].mxu0
        %v2043 = vadd.f32 %v1970, %v2042
        %v2044 = vpop.f32.mrb[0].mxu0
        %v2045 = vadd.f32 %v1972, %v2044
        %v2046 = vpop.f32.mrb[0].mxu0
        %v2047 = vadd.f32 %v1974, %v2046
        %2048 = vdwg.mxu0
        %2049 = vst [vmem:[%s177] sm:$0xff] %v2011
        %2050 = vst [vmem:[%s177 + $0x8] sm:$0xff] %v2013
        %2051 = vst [vmem:[%s177 + $0x10] sm:$0xff] %v2015
        %2052 = vst [vmem:[%s177 + $0x18] sm:$0xff] %v2017
        %2053 = vst [vmem:[%s177 + $0x20] sm:$0xff] %v2021
        %2054 = vst [vmem:[%s177 + $0x28] sm:$0xff] %v2023
        %2055 = vst [vmem:[%s177 + $0x30] sm:$0xff] %v2025
        %2056 = vst [vmem:[%s177 + $0x38] sm:$0xff] %v2027
        %2057 = vst [vmem:[%s177 + $0x40] sm:$0xff] %v2031
        %2058 = vst [vmem:[%s177 + $0x48] sm:$0xff] %v2033
        %2059 = vst [vmem:[%s177 + $0x50] sm:$0xff] %v2035
        %2060 = vst [vmem:[%s177 + $0x58] sm:$0xff] %v2037
        %2061 = vst [vmem:[%s177 + $0x60] sm:$0xff] %v2041
        %2062 = vst [vmem:[%s177 + $0x68] sm:$0xff] %v2043
        %2063 = vst [vmem:[%s177 + $0x70] sm:$0xff] %v2045
        %2064 = vst [vmem:[%s177 + $0x78] sm:$0xff] %v2047
        %s2065 = sand.u32 %s107, 1
        %s2066 = scalar_lea.sflag [#allocation3], %s2065
        %s2067 = sand.u32 %s107, 1
        %s2068 = smul.addr %s2067, 128
        %s2069 = scalar_lea.vmem [#allocation2], %s2068
        // Predicated region
        $region33: #{downsample_conv.1} parent=31 // pred_check
          %p2070 = pneg %p117
        $region34: #{downsample_conv.1} parent=31 // pred_check_branch
          %2072 = sbr.rel (%p2070) target = $region36
        $region35: #{downsample_conv.1} parent=31 // pred_region
          %s2073 = smul.u32 8, %s22
          %s2075 = ssub.s32 2048, 2048
          %2076 = vsyncadd %s2066, %s2075
          %s2077 = smul.addr %s2073, 2
          %s2078 = smul.addr %s21, 16
          %s2079 = sadd.s32 %s2077, %s2078
          %s2080 = smul.addr %s2079, 128
          %s2081 = scalar_lea.hbm %s3, %s2080
          %s2082 = sshll.u32 %s2069, 4
          %s2083 = int_to_ptr.vmem [resolvable:$true] %s2082
          %2088 = dma.vmem_to_hbm [thread:$0]  %s2083, 2048, %s2081, %s2066, 256, 256, 16
        $region36: #{downsample_conv.1} parent=31 // pred_fallthru
          _
      $region32: #{downsample_conv.1} parent=5 // pred_fallthru
        _
      %p2089 = scmp.le.s32.totalorder 2, %s12
      // Predicated region
      $region37: #{downsample_conv.1} parent=5 // pred_check
        %p2090 = pneg %p2089
      $region38: #{downsample_conv.1} parent=5 // pred_check_branch
        %2092 = sbr.rel (%p2090) target = $region40
      $region39: #{downsample_conv.1} parent=5 // pred_region
        %s2093 = ssub.s32 %s12, 2
        // Predicated region
        $region41: #{downsample_conv.1} parent=39 // pred_check
          %p2094 = pneg %p123
        $region42: #{downsample_conv.1} parent=39 // pred_check_branch
          %2096 = sbr.rel (%p2094) target = $region44
        $region43: #{downsample_conv.1} parent=39 // pred_region
          %s2097 = sand.u32 %s108, 1
          %s2098 = scalar_lea.sflag [#allocation3], %s2097
          %s2099 = sand.u32 %s108, 1
          %s2100 = smul.addr %s2099, 128
          %s2101 = scalar_lea.vmem [#allocation2], %s2100
          %2102 = dma.done %s2098, 2048
        $region44: #{downsample_conv.1} parent=39 // pred_fallthru
          _
      $region40: #{downsample_conv.1} parent=5 // pred_fallthru
        _
    $region6: #{downsample_conv.1} parent=1 // loop_footer
      %s16 = sadd.s32 1, %s12
    $region7: #{downsample_conv.1} parent=1 // loop_footer_branch
      %11 = sbr.rel target = $region3
    $region8: #{downsample_conv.1} parent=1 // loop_exit
      _
    %2103 = vsyncpa [#allocation3], 1
    %s2104 = scalar_lea.sflag [#allocation3], 1
    %2105 = vsyncpa %s2104, 1

</llo_original>
